<compile_context>
chip_gen: v7x
topology: tpu7x:2x2x1
jax: 0.10.0
libtpu: 0.0.40
codegen_flags: <defaults>
</compile_context>

<pallas_src>
import functools
import math

import jax
import jax.numpy as jnp
from jax.experimental import pallas as pl
from jax.experimental.pallas import tpu as pltpu

COMPUTE_DTYPE = jnp.bfloat16      # MXU-rated input dtype; accumulation stays f32


def _round_up(x, m):
    return (x + m - 1) // m * m


def _cdiv(a, b):
    return -(-a // b)


# ----------------------------------------------------------------------------
# Pallas conv kernel
# ----------------------------------------------------------------------------
def _conv_kernel(x_ref, w_ref, b_ref, o_ref, *, K, Wp, TR, groups, relu):
    """Same-padding KxK (optionally grouped) conv as statically-shifted MXU matmuls.

    x_ref: (S_in, Cin)              one sample's zero-padded, flattened rows (resident)
    w_ref: (G, K*K, cin_g, cout_g)  weights, tap-major (cross-correlation, like PyTorch)
    b_ref: (1, G*cout_g)            bias (f32)
    o_ref: (TR, G*cout_g)           one output row tile

    Per group g, the K*K tap dots accumulate into a local f32 value; bias + ReLU are
    fused into a single store of o_ref (no per-tap read-modify-write of the output).
    """
    cin_g = w_ref.shape[2]
    cout_g = w_ref.shape[3]
    r0 = pl.multiple_of(pl.program_id(1) * TR, 8)          # TR is a multiple of 8
    for g in range(groups):
        ci = g * cin_g
        acc = None
        for t in range(K * K):
            kh, kw = divmod(t, K)
            # kh*Wp is 8-aligned (Wp padded to a multiple of 8); kw is a static offset
            patch = x_ref[pl.ds(r0 + kh * Wp + kw, TR), pl.ds(ci, cin_g)]
            d = jnp.dot(patch, w_ref[g, t], preferred_element_type=jnp.float32)
            acc = d if acc is None else acc + d
        acc = acc + b_ref[:, pl.ds(g * cout_g, cout_g)]
        if relu:
            acc = jnp.maximum(acc, 0.0)
        o_ref[:, pl.ds(g * cout_g, cout_g)] = acc.astype(o_ref.dtype)


@functools.lru_cache(maxsize=None)
def _conv_call(N, H, W, G, K, cin_g, cout_g, cout_real, relu, dtype_name):
    """Build (and cache) a jitted NHWC same-conv for one static configuration."""
    dtype = jnp.dtype(dtype_name)
    Cin, Cout = G * cin_g, G * cout_g
    p = (K - 1) // 2
    Hp, Wp = H + 2 * p, W + 2 * p
    Wp8 = _round_up(Wp, 8)                  # sublane-align the kh*Wp tap offsets
    extra_w = Wp8 - Wp
    HW = H * Wp8                            # output rows per sample (no vertical-pad rows)
    TR = min(_round_up(HW, 8), 512)         # row tile: multiple of 8, VMEM-sized
    num_tiles = _cdiv(HW, TR)
    HW_pad = num_tiles * TR
    needed_rows = HW_pad + (K - 1) * Wp8 + (K - 1)       # max tap read + 1
    eh = max(0, _cdiv(needed_rows - Hp * Wp8, Wp8))      # extra zero rows at the bottom
    S_in = (Hp + eh) * Wp8

    # VMEM budget: double-buffered in/out blocks + resident weights + f32 accumulators
    isz = dtype.itemsize
    in_b = S_in * _round_up(Cin, 128) * isz
    out_b = TR * _round_up(Cout, 128) * isz
    w_b = G * K * K * _round_up(cin_g, 128) * _round_up(cout_g, 128) * isz
    acc_b = G * TR * _round_up(cout_g, 128) * 4
    vmem_limit = int(min(64 << 20,
                         max(32 << 20, 2 * (in_b + out_b + w_b) + acc_b + (4 << 20))))

    kernel = functools.partial(_conv_kernel, K=K, Wp=Wp8, TR=TR, groups=G, relu=relu)
    call = pl.pallas_call(
        kernel,
        out_shape=jax.ShapeDtypeStruct((N, HW_pad, Cout), dtype),
        grid_spec=pltpu.PrefetchScalarGridSpec(
            num_scalar_prefetch=0,
            grid=(N, num_tiles),            # batch x row-tiles; weights stay resident
            in_specs=[
                pl.BlockSpec((None, S_in, Cin), lambda n, r: (n, 0, 0)),
                pl.BlockSpec((G, K * K, cin_g, cout_g), lambda n, r: (0, 0, 0, 0)),
                pl.BlockSpec((1, Cout), lambda n, r: (0, 0)),
            ],
            out_specs=pl.BlockSpec((None, TR, Cout), lambda n, r: (n, r, 0)),
        ),
        compiler_params=pltpu.CompilerParams(
            dimension_semantics=("parallel", "parallel"),   # megacore on v7x
            vmem_limit_bytes=vmem_limit,
        ),
    )

    def fn(x, w, b):
        # single pad: spatial halo + right lane-alignment columns + bottom slack rows
        x = x.astype(dtype)
        xp = jnp.pad(x, ((0, 0), (p, p + eh), (p, p + extra_w), (0, 0)))
        x_flat = xp.reshape(N, S_in, Cin)
        out = call(x_flat, w.reshape(G, K * K, cin_g, cout_g), b.reshape(1, Cout))
        # taps that wrap across the flattened right edge only land in cropped xo >= W cols
        out = out[:, :HW].reshape(N, H, Wp8, Cout)
        return out[:, :, :W, :cout_real]

    return jax.jit(fn)


# ----------------------------------------------------------------------------
# Weight packing (done once, at prepare time)
# ----------------------------------------------------------------------------
def pack_conv(w, b, *, relu, dtype=COMPUTE_DTYPE):
    """w: (G, K, K, cin_g, cout_g) f32,  b: (G*cout_g,) f32  ->  packed conv spec."""
    G, K, _, cin_g, cout_g = w.shape
    cout_real = G * cout_g
    pad_c = (-cout_real) % 128
    if pad_c:                               # lane-dense stores: zero-pad filter columns
        assert G == 1, "lane padding only supported for ungrouped convs"
        w = jnp.pad(w, ((0, 0), (0, 0), (0, 0), (0, 0), (0, pad_c)))
        b = jnp.pad(b, (0, pad_c))
        cout_g = cout_g + pad_c
    return dict(w=jnp.asarray(w, dtype), b=jnp.asarray(b, jnp.float32),
                G=G, K=K, cin_g=cin_g, cout_g=cout_g, cout_real=cout_real,
                relu=bool(relu), dtype=jnp.dtype(dtype).name)


def conv_apply(x, pk):
    N, H, W, Cin = x.shape
    assert Cin == pk["G"] * pk["cin_g"]
    fn = _conv_call(N, H, W, pk["G"], pk["K"], pk["cin_g"], pk["cout_g"],
                    pk["cout_real"], pk["relu"], pk["dtype"])
    return fn(x, pk["w"], pk["b"])


def conv2d(x, w, b, *, relu, dtype=COMPUTE_DTYPE):
    """Convenience (tests): NHWC same conv + fused bias/ReLU via the Pallas kernel."""
    return conv_apply(x, pack_conv(w, b, relu=relu, dtype=dtype))


# ----------------------------------------------------------------------------
# Non-Pallas helpers (synthetic backbone + reference path)
# ----------------------------------------------------------------------------
def maxpool2x2(x):
    # TODO(synk): 2x2 max-pool of the synthetic backbone kept in plain JAX
    # (get_backbone is external to the provided module; the stage convs are the hot path).
    n, h, w, c = x.shape
    return jnp.max(x.reshape(n, h // 2, 2, w // 2, 2, c), axis=(2, 4))


def _conv_ref(x, w, b, relu, dtype=None):
    """XLA-native NHWC same-conv (backbone + reference path). Mirrors the kernel casts."""
    if dtype is not None:
        x = x.astype(dtype)
        w = w.astype(dtype)
    y = jax.lax.conv_general_dilated(
        x, w, (1, 1), "SAME", dimension_numbers=("NHWC", "HWIO", "NHWC"),
        preferred_element_type=jnp.float32) + b.astype(jnp.float32)
    y = jnp.maximum(y, 0.0) if relu else y
    return y.astype(dtype) if dtype is not None else y


# ----------------------------------------------------------------------------
# Deterministic parameter construction (synthetic weights, PyTorch shapes)
# ----------------------------------------------------------------------------
def init_openpose_params(key, n_limbs, n_keypoints, in_ch=3):
    paf_ch = n_limbs * 2
    heat_ch = n_keypoints + 1
    keys = iter(jax.random.split(key, 256))

    def conv_p(k, cin, cout):
        kw_, kb_ = jax.random.split(next(keys))
        w = jax.random.normal(kw_, (k, k, cin, cout), jnp.float32) / math.sqrt(k * k * cin)
        b = 0.01 * jax.random.normal(kb_, (cout,), jnp.float32)
        return (w, b)

    params = {}
    # TODO(synk): synthetic stride-8 conv backbone standing in for get_backbone('vgg19_first10')
    b_ch = 32
    params["backbone"] = [
        conv_p(3, in_ch, 16), conv_p(3, 16, 16),
        conv_p(3, 16, 32), conv_p(3, 32, 32),
        conv_p(3, 32, 32), conv_p(3, 32, 32),
    ]
    # _get_intro(b_ch, 128)
    mid = 2 ** round((math.log2(b_ch) + math.log2(128)) / 2)
    params["intro"] = [conv_p(3, b_ch, mid), conv_p(3, mid, 128)]

    def stage1_branch(out_ch):
        return [conv_p(3, 128, 128), conv_p(3, 128, 128), conv_p(3, 128, 128),
                conv_p(1, 128, 512), conv_p(1, 512, out_ch)]

    params["stage1"] = {"paf": stage1_branch(paf_ch), "heat": stage1_branch(heat_ch)}

    t_in = 128 + paf_ch + heat_ch

    def staget_branch(out_ch):
        return ([conv_p(7, t_in, 128)]
                + [conv_p(7, 128, 128) for _ in range(4)]
                + [conv_p(1, 128, 128), conv_p(1, 128, out_ch)])

    params["stages"] = [{"paf": staget_branch(paf_ch), "heat": staget_branch(heat_ch)}
                        for _ in range(5)]        # stages 2..6 (n_stages=6 total)
    return params


# ----------------------------------------------------------------------------
# paf/heat branch fusion (halves launches; fused weights built ONCE at prepare time)
# ----------------------------------------------------------------------------
def _fuse_stage_branches(paf_layers, heat_layers, dtype=COMPUTE_DTYPE):
    """Fuse a stage's paf/heat branches into one packed conv chain.

    layer 0      : both branches read the same input -> concat weights along Cout
    layers 1..n-2: per-branch                        -> grouped conv (2 groups)
    last layer   : per-branch 1x1                    -> block-diagonal fused 1x1
    """
    fused = []
    n = len(paf_layers)
    for i, ((wp, bp), (wh, bh)) in enumerate(zip(paf_layers, heat_layers)):
        relu = i < n - 1
        if i == 0:
            w = jnp.concatenate([wp, wh], axis=-1)[None]     # (1,K,K,Cin,2*cout)
        elif i < n - 1:
            w = jnp.stack([wp, wh], axis=0)                  # (2,K,K,cin,cout)
        else:
            k, _, cin, co_p = wp.shape
            co_h = wh.shape[-1]
            w = jnp.zeros((k, k, 2 * cin, co_p + co_h), jnp.float32)
            w = w.at[:, :, :cin, :co_p].set(wp)
            w = w.at[:, :, cin:, co_p:].set(wh)
            w = w[None]                                      # (1,K,K,2*cin,co_p+co_h)
        b = jnp.concatenate([bp, bh], axis=0)
        fused.append(pack_conv(w, b, relu=relu, dtype=dtype))
    return fused


def _run_fused_branches(fused_layers, x, paf_ch, heat_ch):
    h = x
    for pk in fused_layers:
        h = conv_apply(h, pk)
    return h[..., :paf_ch], h[..., paf_ch:paf_ch + heat_ch]


def prepare_openpose(params, dtype=COMPUTE_DTYPE):
    """Pre-fuse / pre-pad / pre-cast all stage weights once."""
    paf_ch = params["stage1"]["paf"][-1][1].shape[0]
    heat_ch = params["stage1"]["heat"][-1][1].shape[0]
    return dict(
        backbone=params["backbone"],
        intro=[pack_conv(w[None], b, relu=True, dtype=dtype) for (w, b) in params["intro"]],
        stage1=_fuse_stage_branches(params["stage1"]["paf"], params["stage1"]["heat"], dtype),
        stages=[_fuse_stage_branches(st["paf"], st["heat"], dtype) for st in params["stages"]],
        paf_ch=paf_ch, heat_ch=heat_ch)


# ----------------------------------------------------------------------------
# OpenPoseV1 forward
# ----------------------------------------------------------------------------
def backbone_forward(bb, x):
    # TODO(synk): get_backbone('vgg19_first10') is external to the module; this synthetic
    # stride-8 stand-in stays on XLA's native conv (Cin=3/16/32 would under-fill the MXU).
    x = _conv_ref(x, *bb[0], True)
    x = _conv_ref(x, *bb[1], True)
    x = maxpool2x2(x)
    x = _conv_ref(x, *bb[2], True)
    x = _conv_ref(x, *bb[3], True)
    x = maxpool2x2(x)
    x = _conv_ref(x, *bb[4], True)
    x = _conv_ref(x, *bb[5], True)
    x = maxpool2x2(x)
    return x


def openpose_forward(prepared, x_nchw):
    """OpenPoseV1.forward with the intro + all stage convs running as Pallas kernels."""
    x = jnp.transpose(x_nchw, (0, 2, 3, 1)).astype(jnp.float32)   # NCHW -> NHWC
    x = backbone_forward(prepared["backbone"], x)
    for pk in prepared["intro"]:
        x = conv_apply(x, pk)
    paf_ch, heat_ch = prepared["paf_ch"], prepared["heat_ch"]
    paf, heat = _run_fused_branches(prepared["stage1"], x, paf_ch, heat_ch)
    for fused in prepared["stages"]:
        feat = jnp.concatenate([paf, heat, x], axis=-1)   # cat((paf, heat, x), dim=C)
        paf, heat = _run_fused_branches(fused, feat, paf_ch, heat_ch)
    # back to NCHW float32 like the PyTorch module
    return (jnp.transpose(paf, (0, 3, 1, 2)).astype(jnp.float32),
            jnp.transpose(heat, (0, 3, 1, 2)).astype(jnp.float32))


def openpose_forward_ref(params, x_nchw, dtype=COMPUTE_DTYPE):
    """Unfused XLA-conv reference with mirrored casts (structural wiring check)."""
    x = jnp.transpose(x_nchw, (0, 2, 3, 1)).astype(jnp.float32)
    x = backbone_forward(params["backbone"], x)
    for (w, b) in params["intro"]:
        x = _conv_ref(x, w, b, True, dtype)

    def run_branch(layers, inp):
        h = inp
        for i, (w, b) in enumerate(layers):
            h = _conv_ref(h, w, b, i < len(layers) - 1, dtype)
        return h

    paf = run_branch(params["stage1"]["paf"], x)
    heat = run_branch(params["stage1"]["heat"], x)
    for st in params["stages"]:
        feat = jnp.concatenate([paf, heat, x], axis=-1)
        paf = run_branch(st["paf"], feat)
        heat = run_branch(st["heat"], feat)
    return (jnp.transpose(paf, (0, 3, 1, 2)).astype(jnp.float32),
            jnp.transpose(heat, (0, 3, 1, 2)).astype(jnp.float32))


# ----------------------------------------------------------------------------
if __name__ == "__main__":
    # --- A/B: kernel correctness in f32 on integer-valued data (exact) ---
    k1, k2, k3, k4, k5, k6 = jax.random.split(jax.random.PRNGKey(7), 6)
    xi = jax.random.randint(k1, (2, 6, 6, 5), -2, 3).astype(jnp.float32)
    wi = jax.random.randint(k2, (3, 3, 5, 7), -2, 3).astype(jnp.float32)
    bi = jax.random.randint(k3, (7,), -2, 3).astype(jnp.float32)
    ref = jax.lax.conv_general_dilated(
        xi, wi, (1, 1), "SAME", dimension_numbers=("NHWC", "HWIO", "NHWC")) + bi
    got = conv2d(xi, wi[None], bi, relu=False, dtype=jnp.float32)
    assert jnp.max(jnp.abs(got - ref)) < 1e-4, "Pallas conv mismatch (f32)"

    xg = jax.random.randint(k4, (1, 4, 4, 256), -1, 2).astype(jnp.float32)
    wg = jax.random.randint(k5, (2, 3, 3, 128, 128), -1, 2).astype(jnp.float32)
    bg = jax.random.randint(k6, (256,), -1, 2).astype(jnp.float32)
    got_g = conv2d(xg, wg, bg, relu=True, dtype=jnp.float32)
    r0 = jax.lax.conv_general_dilated(
        xg[..., :128], wg[0], (1, 1), "SAME",
        dimension_numbers=("NHWC", "HWIO", "NHWC")) + bg[:128]
    r1 = jax.lax.conv_general_dilated(
        xg[..., 128:], wg[1], (1, 1), "SAME",
        dimension_numbers=("NHWC", "HWIO", "NHWC")) + bg[128:]
    ref_g = jnp.maximum(jnp.concatenate([r0, r1], axis=-1), 0.0)
    assert jnp.max(jnp.abs(got_g - ref_g)) < 1e-3, "Pallas grouped conv mismatch"

    # --- C: bf16 path, small integers stay exact (pins the cast path) ---
    got_bf = conv2d(xi, wi[None], bi, relu=True, dtype=jnp.bfloat16)
    assert jnp.max(jnp.abs(got_bf.astype(jnp.float32) - jnp.maximum(ref, 0.0))) < 1e-4, \
        "Pallas bf16 conv mismatch"

    # --- D: per-layer integer check of fused branch wiring (concat/grouped/block-diag) ---
    kd = jax.random.split(jax.random.PRNGKey(3), 8)

    def int_conv(key, k, cin, cout):
        kw_, kb_ = jax.random.split(key)
        w = jax.random.randint(kw_, (k, k, cin, cout), -1, 2).astype(jnp.float32)
        b = jax.random.randint(kb_, (cout,), -1, 2).astype(jnp.float32)
        return (w, b)

    paf_ls = [int_conv(kd[0], 3, 24, 64), int_conv(kd[1], 3, 64, 64), int_conv(kd[2], 1, 64, 3)]
    heat_ls = [int_conv(kd[3], 3, 24, 64), int_conv(kd[4], 3, 64, 64), int_conv(kd[5], 1, 64, 5)]
    xd = jax.random.randint(kd[6], (1, 5, 5, 24), 0, 2).astype(jnp.float32)
    fused_d = _fuse_stage_branches(paf_ls, heat_ls, dtype=jnp.float32)
    pf, ht = _run_fused_branches(fused_d, xd, 3, 5)

    def run_branch_ref(layers, inp):
        h = inp
        for i, (w, b) in enumerate(layers):
            h = _conv_ref(h, w, b, i < len(layers) - 1)
        return h

    assert jnp.max(jnp.abs(pf - run_branch_ref(paf_ls, xd))) < 1e-2, "fused paf wiring (int)"
    assert jnp.max(jnp.abs(ht - run_branch_ref(heat_ls, xd))) < 1e-2, "fused heat wiring (int)"

    # --- E: full OpenPoseV1 forward (n_limbs=2 -> paf_ch=4, n_keypoints=3 -> heat_ch=4) ---
    pkey, xkey = jax.random.split(jax.random.PRNGKey(0))
    params = init_openpose_params(pkey, n_limbs=2, n_keypoints=3)
    prepared = prepare_openpose(params)                         # weights fused/packed once
    x = jax.random.normal(xkey, (2, 3, 32, 32), jnp.float32)    # NCHW, stride-8 -> 4x4 maps

    pafmap, heatmap = openpose_forward(prepared, x)
    jax.block_until_ready((pafmap, heatmap))
    assert pafmap.shape == (2, 4, 4, 4) and heatmap.shape == (2, 4, 4, 4)

    # structural check of the fused wiring vs an unfused lax.conv reference with mirrored
    # bf16 casts (loose: accumulation order / per-layer bf16 rounding may differ slightly;
    # the kernel numerics themselves are pinned exactly by the integer tests above).
    paf_r, heat_r = openpose_forward_ref(params, x)
    tol_p = 1e-1 * (1.0 + float(jnp.max(jnp.abs(paf_r))))
    tol_h = 1e-1 * (1.0 + float(jnp.max(jnp.abs(heat_r))))
    assert float(jnp.max(jnp.abs(pafmap - paf_r))) < tol_p, "fused paf wiring mismatch"
    assert float(jnp.max(jnp.abs(heatmap - heat_r))) < tol_h, "fused heat wiring mismatch"

    print("KERNEL_OK")
</pallas_src>

<mosaic_0001>
module attributes {stable_mosaic.version = 11 : i64} {
  func.func @_conv_kernel(%arg0: i32, %arg1: i32, %arg2: memref<1x72x5xf32, #tpu.memory_space<vmem>>, %arg3: memref<1x9x5x128xf32, #tpu.memory_space<vmem>>, %arg4: memref<1x128xf32, #tpu.memory_space<vmem>>, %arg5: memref<1x48x128xf32, #tpu.memory_space<vmem>>) attributes {dimension_semantics = [#tpu.dimension_semantics<parallel>, #tpu.dimension_semantics<parallel>], iteration_bounds = array<i64: 2, 1>, scalar_prefetch = 0 : i64, scratch_operands = 0 : i64, tpu.core_type = #tpu.core_type<tc>, window_params = [{transform_indices = @transform_0, window_bounds = array<i64: 1, 72, 5>}, {pipeline_mode = #tpu.pipeline_mode<synchronous>, transform_indices = @transform_1, window_bounds = array<i64: 1, 9, 5, 128>}, {pipeline_mode = #tpu.pipeline_mode<synchronous>, transform_indices = @transform_2, window_bounds = array<i64: 1, 128>}, {transform_indices = @transform_3, window_bounds = array<i64: 1, 48, 128>}]} {
    %c48_i32 = arith.constant 48 : i32
    %0 = arith.muli %arg1, %c48_i32 : i32
    %1 = tpu.assume_multiple %0, 8 : i32
    %c0_i32 = arith.constant 0 : i32
    %2 = arith.addi %1, %c0_i32 : i32
    %c0_i32_0 = arith.constant 0 : i32
    %3 = arith.addi %2, %c0_i32_0 : i32
    %c0 = arith.constant 0 : index
    %4 = arith.index_cast %3 : i32 to index
    %c0_1 = arith.constant 0 : index
    %5 = vector.load %arg2[%c0, %4, %c0_1] : memref<1x72x5xf32, #tpu.memory_space<vmem>>, vector<1x48x5xf32>
    %6 = vector.shape_cast %5 : vector<1x48x5xf32> to vector<48x5xf32>
    %c0_2 = arith.constant 0 : index
    %c0_3 = arith.constant 0 : index
    %c0_4 = arith.constant 0 : index
    %c0_5 = arith.constant 0 : index
    %7 = vector.load %arg3[%c0_2, %c0_3, %c0_4, %c0_5] : memref<1x9x5x128xf32, #tpu.memory_space<vmem>>, vector<1x1x5x128xf32>
    %8 = vector.shape_cast %7 : vector<1x1x5x128xf32> to vector<5x128xf32>
    %cst = arith.constant dense<0.000000e+00> : vector<48x128xf32>
    %9 = tpu.matmul %6, %8, %cst {dimension_numbers = #tpu.dot_dimension_numbers<[1], [0], [0], [1], [0, 0, 1, 1], [], []>} : vector<48x5xf32>, vector<5x128xf32>, vector<48x128xf32> -> vector<48x128xf32>
    %c0_i32_6 = arith.constant 0 : i32
    %10 = arith.addi %1, %c0_i32_6 : i32
    %c1_i32 = arith.constant 1 : i32
    %11 = arith.addi %10, %c1_i32 : i32
    %c0_7 = arith.constant 0 : index
    %12 = arith.index_cast %11 : i32 to index
    %c0_8 = arith.constant 0 : index
    %13 = vector.load %arg2[%c0_7, %12, %c0_8] : memref<1x72x5xf32, #tpu.memory_space<vmem>>, vector<1x48x5xf32>
    %14 = vector.shape_cast %13 : vector<1x48x5xf32> to vector<48x5xf32>
    %c0_9 = arith.constant 0 : index
    %c1 = arith.constant 1 : index
    %c0_10 = arith.constant 0 : index
    %c0_11 = arith.constant 0 : index
    %15 = vector.load %arg3[%c0_9, %c1, %c0_10, %c0_11] : memref<1x9x5x128xf32, #tpu.memory_space<vmem>>, vector<1x1x5x128xf32>
    %16 = vector.shape_cast %15 : vector<1x1x5x128xf32> to vector<5x128xf32>
    %cst_12 = arith.constant dense<0.000000e+00> : vector<48x128xf32>
    %17 = tpu.matmul %14, %16, %cst_12 {dimension_numbers = #tpu.dot_dimension_numbers<[1], [0], [0], [1], [0, 0, 1, 1], [], []>} : vector<48x5xf32>, vector<5x128xf32>, vector<48x128xf32> -> vector<48x128xf32>
    %18 = arith.addf %9, %17 : vector<48x128xf32>
    %c0_i32_13 = arith.constant 0 : i32
    %19 = arith.addi %1, %c0_i32_13 : i32
    %c2_i32 = arith.constant 2 : i32
    %20 = arith.addi %19, %c2_i32 : i32
    %c0_14 = arith.constant 0 : index
    %21 = arith.index_cast %20 : i32 to index
    %c0_15 = arith.constant 0 : index
    %22 = vector.load %arg2[%c0_14, %21, %c0_15] : memref<1x72x5xf32, #tpu.memory_space<vmem>>, vector<1x48x5xf32>
    %23 = vector.shape_cast %22 : vector<1x48x5xf32> to vector<48x5xf32>
    %c0_16 = arith.constant 0 : index
    %c2 = arith.constant 2 : index
    %c0_17 = arith.constant 0 : index
    %c0_18 = arith.constant 0 : index
    %24 = vector.load %arg3[%c0_16, %c2, %c0_17, %c0_18] : memref<1x9x5x128xf32, #tpu.memory_space<vmem>>, vector<1x1x5x128xf32>
    %25 = vector.shape_cast %24 : vector<1x1x5x128xf32> to vector<5x128xf32>
    %cst_19 = arith.constant dense<0.000000e+00> : vector<48x128xf32>
    %26 = tpu.matmul %23, %25, %cst_19 {dimension_numbers = #tpu.dot_dimension_numbers<[1], [0], [0], [1], [0, 0, 1, 1], [], []>} : vector<48x5xf32>, vector<5x128xf32>, vector<48x128xf32> -> vector<48x128xf32>
    %27 = arith.addf %18, %26 : vector<48x128xf32>
    %c8_i32 = arith.constant 8 : i32
    %28 = arith.addi %1, %c8_i32 : i32
    %c0_i32_20 = arith.constant 0 : i32
    %29 = arith.addi %28, %c0_i32_20 : i32
    %c0_21 = arith.constant 0 : index
    %30 = arith.index_cast %29 : i32 to index
    %c0_22 = arith.constant 0 : index
    %31 = vector.load %arg2[%c0_21, %30, %c0_22] : memref<1x72x5xf32, #tpu.memory_space<vmem>>, vector<1x48x5xf32>
    %32 = vector.shape_cast %31 : vector<1x48x5xf32> to vector<48x5xf32>
    %c0_23 = arith.constant 0 : index
    %c3 = arith.constant 3 : index
    %c0_24 = arith.constant 0 : index
    %c0_25 = arith.constant 0 : index
    %33 = vector.load %arg3[%c0_23, %c3, %c0_24, %c0_25] : memref<1x9x5x128xf32, #tpu.memory_space<vmem>>, vector<1x1x5x128xf32>
    %34 = vector.shape_cast %33 : vector<1x1x5x128xf32> to vector<5x128xf32>
    %cst_26 = arith.constant dense<0.000000e+00> : vector<48x128xf32>
    %35 = tpu.matmul %32, %34, %cst_26 {dimension_numbers = #tpu.dot_dimension_numbers<[1], [0], [0], [1], [0, 0, 1, 1], [], []>} : vector<48x5xf32>, vector<5x128xf32>, vector<48x128xf32> -> vector<48x128xf32>
    %36 = arith.addf %27, %35 : vector<48x128xf32>
    %c8_i32_27 = arith.constant 8 : i32
    %37 = arith.addi %1, %c8_i32_27 : i32
    %c1_i32_28 = arith.constant 1 : i32
    %38 = arith.addi %37, %c1_i32_28 : i32
    %c0_29 = arith.constant 0 : index
    %39 = arith.index_cast %38 : i32 to index
    %c0_30 = arith.constant 0 : index
    %40 = vector.load %arg2[%c0_29, %39, %c0_30] : memref<1x72x5xf32, #tpu.memory_space<vmem>>, vector<1x48x5xf32>
    %41 = vector.shape_cast %40 : vector<1x48x5xf32> to vector<48x5xf32>
    %c0_31 = arith.constant 0 : index
    %c4 = arith.constant 4 : index
    %c0_32 = arith.constant 0 : index
    %c0_33 = arith.constant 0 : index
    %42 = vector.load %arg3[%c0_31, %c4, %c0_32, %c0_33] : memref<1x9x5x128xf32, #tpu.memory_space<vmem>>, vector<1x1x5x128xf32>
    %43 = vector.shape_cast %42 : vector<1x1x5x128xf32> to vector<5x128xf32>
    %cst_34 = arith.constant dense<0.000000e+00> : vector<48x128xf32>
    %44 = tpu.matmul %41, %43, %cst_34 {dimension_numbers = #tpu.dot_dimension_numbers<[1], [0], [0], [1], [0, 0, 1, 1], [], []>} : vector<48x5xf32>, vector<5x128xf32>, vector<48x128xf32> -> vector<48x128xf32>
    %45 = arith.addf %36, %44 : vector<48x128xf32>
    %c8_i32_35 = arith.constant 8 : i32
    %46 = arith.addi %1, %c8_i32_35 : i32
    %c2_i32_36 = arith.constant 2 : i32
    %47 = arith.addi %46, %c2_i32_36 : i32
    %c0_37 = arith.constant 0 : index
    %48 = arith.index_cast %47 : i32 to index
    %c0_38 = arith.constant 0 : index
    %49 = vector.load %arg2[%c0_37, %48, %c0_38] : memref<1x72x5xf32, #tpu.memory_space<vmem>>, vector<1x48x5xf32>
    %50 = vector.shape_cast %49 : vector<1x48x5xf32> to vector<48x5xf32>
    %c0_39 = arith.constant 0 : index
    %c5 = arith.constant 5 : index
    %c0_40 = arith.constant 0 : index
    %c0_41 = arith.constant 0 : index
    %51 = vector.load %arg3[%c0_39, %c5, %c0_40, %c0_41] : memref<1x9x5x128xf32, #tpu.memory_space<vmem>>, vector<1x1x5x128xf32>
    %52 = vector.shape_cast %51 : vector<1x1x5x128xf32> to vector<5x128xf32>
    %cst_42 = arith.constant dense<0.000000e+00> : vector<48x128xf32>
    %53 = tpu.matmul %50, %52, %cst_42 {dimension_numbers = #tpu.dot_dimension_numbers<[1], [0], [0], [1], [0, 0, 1, 1], [], []>} : vector<48x5xf32>, vector<5x128xf32>, vector<48x128xf32> -> vector<48x128xf32>
    %54 = arith.addf %45, %53 : vector<48x128xf32>
    %c16_i32 = arith.constant 16 : i32
    %55 = arith.addi %1, %c16_i32 : i32
    %c0_i32_43 = arith.constant 0 : i32
    %56 = arith.addi %55, %c0_i32_43 : i32
    %c0_44 = arith.constant 0 : index
    %57 = arith.index_cast %56 : i32 to index
    %c0_45 = arith.constant 0 : index
    %58 = vector.load %arg2[%c0_44, %57, %c0_45] : memref<1x72x5xf32, #tpu.memory_space<vmem>>, vector<1x48x5xf32>
    %59 = vector.shape_cast %58 : vector<1x48x5xf32> to vector<48x5xf32>
    %c0_46 = arith.constant 0 : index
    %c6 = arith.constant 6 : index
    %c0_47 = arith.constant 0 : index
    %c0_48 = arith.constant 0 : index
    %60 = vector.load %arg3[%c0_46, %c6, %c0_47, %c0_48] : memref<1x9x5x128xf32, #tpu.memory_space<vmem>>, vector<1x1x5x128xf32>
    %61 = vector.shape_cast %60 : vector<1x1x5x128xf32> to vector<5x128xf32>
    %cst_49 = arith.constant dense<0.000000e+00> : vector<48x128xf32>
    %62 = tpu.matmul %59, %61, %cst_49 {dimension_numbers = #tpu.dot_dimension_numbers<[1], [0], [0], [1], [0, 0, 1, 1], [], []>} : vector<48x5xf32>, vector<5x128xf32>, vector<48x128xf32> -> vector<48x128xf32>
    %63 = arith.addf %54, %62 : vector<48x128xf32>
    %c16_i32_50 = arith.constant 16 : i32
    %64 = arith.addi %1, %c16_i32_50 : i32
    %c1_i32_51 = arith.constant 1 : i32
    %65 = arith.addi %64, %c1_i32_51 : i32
    %c0_52 = arith.constant 0 : index
    %66 = arith.index_cast %65 : i32 to index
    %c0_53 = arith.constant 0 : index
    %67 = vector.load %arg2[%c0_52, %66, %c0_53] : memref<1x72x5xf32, #tpu.memory_space<vmem>>, vector<1x48x5xf32>
    %68 = vector.shape_cast %67 : vector<1x48x5xf32> to vector<48x5xf32>
    %c0_54 = arith.constant 0 : index
    %c7 = arith.constant 7 : index
    %c0_55 = arith.constant 0 : index
    %c0_56 = arith.constant 0 : index
    %69 = vector.load %arg3[%c0_54, %c7, %c0_55, %c0_56] : memref<1x9x5x128xf32, #tpu.memory_space<vmem>>, vector<1x1x5x128xf32>
    %70 = vector.shape_cast %69 : vector<1x1x5x128xf32> to vector<5x128xf32>
    %cst_57 = arith.constant dense<0.000000e+00> : vector<48x128xf32>
    %71 = tpu.matmul %68, %70, %cst_57 {dimension_numbers = #tpu.dot_dimension_numbers<[1], [0], [0], [1], [0, 0, 1, 1], [], []>} : vector<48x5xf32>, vector<5x128xf32>, vector<48x128xf32> -> vector<48x128xf32>
    %72 = arith.addf %63, %71 : vector<48x128xf32>
    %c16_i32_58 = arith.constant 16 : i32
    %73 = arith.addi %1, %c16_i32_58 : i32
    %c2_i32_59 = arith.constant 2 : i32
    %74 = arith.addi %73, %c2_i32_59 : i32
    %c0_60 = arith.constant 0 : index
    %75 = arith.index_cast %74 : i32 to index
    %c0_61 = arith.constant 0 : index
    %76 = vector.load %arg2[%c0_60, %75, %c0_61] : memref<1x72x5xf32, #tpu.memory_space<vmem>>, vector<1x48x5xf32>
    %77 = vector.shape_cast %76 : vector<1x48x5xf32> to vector<48x5xf32>
    %c0_62 = arith.constant 0 : index
    %c8 = arith.constant 8 : index
    %c0_63 = arith.constant 0 : index
    %c0_64 = arith.constant 0 : index
    %78 = vector.load %arg3[%c0_62, %c8, %c0_63, %c0_64] : memref<1x9x5x128xf32, #tpu.memory_space<vmem>>, vector<1x1x5x128xf32>
    %79 = vector.shape_cast %78 : vector<1x1x5x128xf32> to vector<5x128xf32>
    %cst_65 = arith.constant dense<0.000000e+00> : vector<48x128xf32>
    %80 = tpu.matmul %77, %79, %cst_65 {dimension_numbers = #tpu.dot_dimension_numbers<[1], [0], [0], [1], [0, 0, 1, 1], [], []>} : vector<48x5xf32>, vector<5x128xf32>, vector<48x128xf32> -> vector<48x128xf32>
    %81 = arith.addf %72, %80 : vector<48x128xf32>
    %c0_66 = arith.constant 0 : index
    %c0_67 = arith.constant 0 : index
    %82 = vector.load %arg4[%c0_66, %c0_67] : memref<1x128xf32, #tpu.memory_space<vmem>>, vector<1x128xf32>
    %83 = vector.broadcast %82 : vector<1x128xf32> to vector<48x128xf32>
    %84 = arith.addf %81, %83 : vector<48x128xf32>
    %c0_68 = arith.constant 0 : index
    %c0_69 = arith.constant 0 : index
    %c0_70 = arith.constant 0 : index
    %85 = vector.load %arg5[%c0_68, %c0_69, %c0_70] : memref<1x48x128xf32, #tpu.memory_space<vmem>>, vector<1x48x128xf32>
    %86 = vector.shape_cast %85 : vector<1x48x128xf32> to vector<48x128xf32>
    %87 = vector.shape_cast %84 : vector<48x128xf32> to vector<1x48x128xf32>
    tpu.vector_store %arg5[%c0_68, %c0_69, %c0_70], %87 {strides = array<i32>} : memref<1x48x128xf32, #tpu.memory_space<vmem>>, vector<1x48x128xf32>,
    return
  }
  func.func @transform_0(%arg0: i32, %arg1: i32) -> (i32, i32, i32) {
    %c0_i32 = arith.constant 0 : i32
    %c0_i32_0 = arith.constant 0 : i32
    %c0_i32_1 = arith.constant 0 : i32
    return %arg0, %c0_i32, %c0_i32_0 : i32, i32, i32
  }
  func.func @transform_1(%arg0: i32, %arg1: i32) -> (i32, i32, i32, i32) {
    %c0_i32 = arith.constant 0 : i32
    %c0_i32_0 = arith.constant 0 : i32
    %c0_i32_1 = arith.constant 0 : i32
    %c0_i32_2 = arith.constant 0 : i32
    %c0_i32_3 = arith.constant 0 : i32
    return %c0_i32, %c0_i32_0, %c0_i32_1, %c0_i32_2 : i32, i32, i32, i32
  }
  func.func @transform_2(%arg0: i32, %arg1: i32) -> (i32, i32) {
    %c0_i32 = arith.constant 0 : i32
    %c0_i32_0 = arith.constant 0 : i32
    %c0_i32_1 = arith.constant 0 : i32
    return %c0_i32, %c0_i32_0 : i32, i32
  }
  func.func @transform_3(%arg0: i32, %arg1: i32) -> (i32, i32, i32) {
    %c0_i32 = arith.constant 0 : i32
    %c0_i32_0 = arith.constant 0 : i32
    return %arg0, %arg1, %c0_i32 : i32, i32, i32
  }
}

</mosaic_0001>

<llo_original>
// kernel: fn.1
$region0: #{fn.1}
  #allocation0 [shape = 'u32[]', space=smem, size = 0x4, offset = 0x4, fixed_abs, tag = 'smem constant byte address 0x4 - core index']
  #allocation1 [shape = 'u32[144,128]{1,0:T(1,128)}', space=vmem, size = 0x12000, scoped, tag = 'internal scratch']
  %s0 = inlined_call_operand.vmem [shape: f32[2,72,5], index: 0, kind: input, shape index: {}]
  %s1 = inlined_call_operand.vmem [shape: f32[1,9,5,128], index: 1, kind: input, shape index: {}]
  %s2 = inlined_call_operand.vmem [shape: f32[1,128], index: 2, kind: input, shape index: {}]
  %s3 = inlined_call_operand.vmem [shape: f32[2,48,128], index: 3, kind: output, shape index: {}]
  %s4 = sld [smem:[#allocation0]]
  $region45: #{fn.1} parent=0
    _
  %s6 = ssub.s32 1, %s4
  %s7 = scalar_select 0, %s6, %s4
  loop: start=0, step=1, limit=4
  $region2: #{fn.1} parent=0 // loop_pre_header
    _
  $region3: #{fn.1} parent=0 // loop_header
    %s9 = sphi 0, %s13
    %p10 = scmp.ge.s32.totalorder %s9, 4
    %s16 = sphi 0, %s28
    %s17 = sphi 0, %s24
    %s18 = sphi 0, %s16
    %s19 = sphi 0, %s17
    %s20 = sphi 0, %s18
    %s21 = sphi 0, %s19
    %s31 = sphi 0, %s33
    %s34 = sphi 0, %s31
    %s35 = sphi 0, %s34
    %s51 = sphi 0, %s35
    %s55 = sphi 0, %s55
    %s57 = sphi 0, %s55
    %s58 = sphi 0, %s57
    %s72 = sphi 0, %s58
    %s76 = sphi 0, %s76
    %s78 = sphi 0, %s76
    %s79 = sphi 0, %s78
    %s93 = sphi 0, %s79
    %s101 = sphi 0, %s103
    %s104 = sphi 0, %s101
    %s105 = sphi 0, %s104
    %s121 = sphi 0, %s105
  $region4: #{fn.1} parent=0 // loop_header_branch
    %12 = sbr.rel (%p10) target = $region8
  $region5: #{fn.1} parent=0 // loop_body
    %s14 = ssub.s32 %s9, 1
    %s15 = ssub.s32 %s9, 2
    %s22 = sadd.s32 1, %s17
    %p23 = scmp.ge.s32.totalorder %s22, 1
    %s24 = scalar_select %p23, 0, %s22
    %s25 = sadd.s32 1, %s16
    %s26 = scalar_select %p23, %s25, %s16
    %p27 = scmp.ge.s32.totalorder %s26, 2
    %s28 = scalar_select %p27, 0, %s26
    %s29 = ssub.s32 %s16, %s28
    %p30 = scmp.eq.s32.totalorder %s29, 0
    %s32 = sadd.s32 %s31, 1
    %s33 = scalar_select %p30, %s31, %s32
    %p36 = pneg %p30
    %p37 = scmp.eq.s32.totalorder %s9, 1
    %p38 = por %p36, %p37
    %p39 = scmp.ne.s32.totalorder %s31, %s34
    %p40 = scmp.eq.s32.totalorder %s9, 0
    %p41 = por %p39, %p40
    %p42 = scmp.ne.s32.totalorder %s31, %s34
    %p43 = scmp.eq.s32.totalorder %s14, 1
    %p44 = por %p42, %p43
    %p45 = scmp.ne.s32.totalorder %s34, %s35
    %p46 = scmp.eq.s32.totalorder %s14, 0
    %p47 = por %p45, %p46
    %p48 = scmp.ne.s32.totalorder %s34, %s35
    %p49 = scmp.eq.s32.totalorder %s15, 1
    %p50 = por %p48, %p49
    %p52 = scmp.ne.s32.totalorder %s35, %s51
    %p53 = scmp.eq.s32.totalorder %s15, 0
    %p54 = por %p52, %p53
    %s56 = sadd.s32 %s55, 1
    %p59 = scmp.eq.s32.totalorder %s9, 1
    %p60 = scmp.ne.s32.totalorder %s55, %s57
    %p61 = scmp.eq.s32.totalorder %s9, 0
    %p62 = por %p60, %p61
    %p63 = scmp.ne.s32.totalorder %s55, %s57
    %p64 = scmp.eq.s32.totalorder %s14, 1
    %p65 = por %p63, %p64
    %p66 = scmp.ne.s32.totalorder %s57, %s58
    %p67 = scmp.eq.s32.totalorder %s14, 0
    %p68 = por %p66, %p67
    %p69 = scmp.ne.s32.totalorder %s57, %s58
    %p70 = scmp.eq.s32.totalorder %s15, 1
    %p71 = por %p69, %p70
    %p73 = scmp.ne.s32.totalorder %s58, %s72
    %p74 = scmp.eq.s32.totalorder %s15, 0
    %p75 = por %p73, %p74
    %s77 = sadd.s32 %s76, 1
    %p80 = scmp.eq.s32.totalorder %s9, 1
    %p81 = scmp.ne.s32.totalorder %s76, %s78
    %p82 = scmp.eq.s32.totalorder %s9, 0
    %p83 = por %p81, %p82
    %p84 = scmp.ne.s32.totalorder %s76, %s78
    %p85 = scmp.eq.s32.totalorder %s14, 1
    %p86 = por %p84, %p85
    %p87 = scmp.ne.s32.totalorder %s78, %s79
    %p88 = scmp.eq.s32.totalorder %s14, 0
    %p89 = por %p87, %p88
    %p90 = scmp.ne.s32.totalorder %s78, %s79
    %p91 = scmp.eq.s32.totalorder %s15, 1
    %p92 = por %p90, %p91
    %p94 = scmp.ne.s32.totalorder %s79, %s93
    %p95 = scmp.eq.s32.totalorder %s15, 0
    %p96 = por %p94, %p95
    %s97 = ssub.s32 %s16, %s28
    %s98 = ssub.s32 %s17, %s24
    %s99 = sor.u32 %s97, %s98
    %p100 = scmp.eq.s32.totalorder %s99, 0
    %s102 = sadd.s32 %s101, 1
    %s103 = scalar_select %p100, %s101, %s102
    %p106 = pneg %p100
    %p107 = scmp.eq.s32.totalorder %s9, 1
    %p108 = por %p106, %p107
    %p109 = scmp.ne.s32.totalorder %s101, %s104
    %p110 = scmp.eq.s32.totalorder %s9, 0
    %p111 = por %p109, %p110
    %p112 = scmp.ne.s32.totalorder %s101, %s104
    %p113 = scmp.eq.s32.totalorder %s14, 1
    %p114 = por %p112, %p113
    %p115 = scmp.ne.s32.totalorder %s104, %s105
    %p116 = scmp.eq.s32.totalorder %s14, 0
    %p117 = por %p115, %p116
    %p118 = scmp.ne.s32.totalorder %s104, %s105
    %p119 = scmp.eq.s32.totalorder %s15, 1
    %p120 = por %p118, %p119
    %p122 = scmp.ne.s32.totalorder %s105, %s121
    %p123 = scmp.eq.s32.totalorder %s15, 0
    %p124 = por %p122, %p123
    %p125 = scmp.le.s32.totalorder 1, %s9
    %p126 = scmp.lt.s32.totalorder %s9, 3
    %p127 = pnand %p125, %p126
    %p128 = pneg %p127
    // Predicated region
    $region9: #{fn.1} parent=5 // pred_check
      _
    $region10: #{fn.1} parent=5 // pred_check_branch
      %130 = sbr.rel (%p127) target = $region12
    $region11: #{fn.1} parent=5 // pred_region
      %s131 = ssub.s32 %s9, 1
      // Predicated region
      $region13: #{fn.1} parent=11 // pred_check
        %p132 = pneg %p68
      $region14: #{fn.1} parent=11 // pred_check_branch
        %134 = sbr.rel (%p132) target = $region16
      $region15: #{fn.1} parent=11 // pred_region
        _
      $region16: #{fn.1} parent=11 // pred_fallthru
        _
      // Predicated region
      $region17: #{fn.1} parent=11 // pred_check
        %p135 = pneg %p89
      $region18: #{fn.1} parent=11 // pred_check_branch
        %137 = sbr.rel (%p135) target = $region20
      $region19: #{fn.1} parent=11 // pred_region
        _
      $region20: #{fn.1} parent=11 // pred_fallthru
        _
    $region12: #{fn.1} parent=5 // pred_fallthru
      _
    %p138 = scmp.lt.s32.totalorder %s9, 2
    // Predicated region
    $region21: #{fn.1} parent=5 // pred_check
      %p139 = pneg %p138
    $region22: #{fn.1} parent=5 // pred_check_branch
      %141 = sbr.rel (%p139) target = $region24
    $region23: #{fn.1} parent=5 // pred_region
      // Predicated region
      $region25: #{fn.1} parent=23 // pred_check
        %p142 = pneg %p41
      $region26: #{fn.1} parent=23 // pred_check_branch
        %144 = sbr.rel (%p142) target = $region28
      $region27: #{fn.1} parent=23 // pred_region
        %p145 = scmp.lt.s32.totalorder %s16, 1
        %s146 = scalar_select %p145, %s16, 1
        %s147 = smul.addr %s146, 9
        %s148 = smul.addr %s147, 8
        %s149 = scalar_lea.vmem %s0, %s148
      $region28: #{fn.1} parent=23 // pred_fallthru
        _
    $region24: #{fn.1} parent=5 // pred_fallthru
      _
    %p150 = scmp.le.s32.totalorder 1, %s9
    %p151 = scmp.lt.s32.totalorder %s9, 3
    %p152 = pnand %p150, %p151
    %p153 = pneg %p152
    // Predicated region
    $region29: #{fn.1} parent=5 // pred_check
      _
    $region30: #{fn.1} parent=5 // pred_check_branch
      %155 = sbr.rel (%p152) target = $region32
    $region31: #{fn.1} parent=5 // pred_region
      %s156 = ssub.s32 %s9, 1
      %p157 = scmp.lt.s32.totalorder %s18, 1
      %s158 = scalar_select %p157, %s18, 1
      %s159 = smul.addr %s158, 9
      %s160 = smul.addr %s159, 8
      %s161 = scalar_lea.vmem %s0, %s160
      %p162 = pneg %p47
      %p163 = pneg %p44
      %p164 = pneg %p68
      %p165 = pneg %p65
      %p166 = pneg %p89
      %p167 = pneg %p86
      %p168 = pneg %p117
      %p169 = pneg %p114
      %s170 = smul.u32 6, %s19
      %p171 = scmp.lt.s32.totalorder %s18, 1
      %s172 = scalar_select %p171, %s18, 1
      %p173 = scmp.lt.s32.totalorder %s170, 5
      %s174 = scalar_select %p173, %s170, 5
      %s175 = smul.addr %s172, 6
      %s176 = sadd.s32 %s174, %s175
      %s177 = smul.addr %s176, 8
      %s178 = scalar_lea.vmem %s3, %s177
      %p179 = scmp.lt.s32.totalorder %s18, 1
      %s180 = scalar_select %p179, %s18, 1
      %s181 = smul.addr %s180, 9
      %s182 = smul.addr %s181, 8
      %s183 = scalar_lea.vmem %s0, %s182
      %s184 = smul.u32 6, %s19
      %p185 = scmp.lt.s32.totalorder %s18, 1
      %s186 = scalar_select %p185, %s18, 1
      %p187 = scmp.lt.s32.totalorder %s184, 5
      %s188 = scalar_select %p187, %s184, 5
      %s189 = smul.addr %s186, 6
      %s190 = sadd.s32 %s188, %s189
      %s191 = smul.addr %s190, 8
      %s192 = scalar_lea.vmem %s3, %s191
      %s193 = smul.u32 6, %s19
      %s194 = smul.u32 %s19, 48
      %s195 = scalar_lea.vmem %s183, %s194
      %v196 = vld [vmem:[%s195] sm:$0xff]
      %v197 = vld [vmem:[%s195 + $0x8] sm:$0xff]
      %v198 = vld [vmem:[%s195 + $0x10] sm:$0xff]
      %v199 = vld [vmem:[%s195 + $0x18] sm:$0xff]
      %v200 = vld [vmem:[%s195 + $0x20] sm:$0xff]
      %v201 = vld [vmem:[%s195 + $0x28] sm:$0xff]
      %v202 = vld [vmem:[%s1] sm:$0x1f]
      %s203 = sadd.s32 %s194, 1
      %s204 = scalar_lea.vmem %s183, %s203
      %v205 = vld [vmem:[%s204] sm:$0xff]
      %v206 = vld [vmem:[%s204 + $0x8] sm:$0xff]
      %v207 = vld [vmem:[%s204 + $0x10] sm:$0xff]
      %v208 = vld [vmem:[%s204 + $0x18] sm:$0xff]
      %v209 = vld [vmem:[%s204 + $0x20] sm:$0xff]
      %v210 = vld [vmem:[%s204 + $0x28] sm:$0xff]
      %s211 = scalar_lea.vmem %s1, 8
      %v212 = vld [vmem:[%s211] sm:$0x1f]
      %vm213 = vcmask 39936
      %v215 = vsel %vm213, %v205, 0
      %v218 = vsel %vm213, %v206, 0
      %v221 = vsel %vm213, %v207, 0
      %v224 = vsel %vm213, %v208, 0
      %v227 = vsel %vm213, %v209, 0
      %v230 = vsel %vm213, %v210, 0
      %vm232 = vcmask 1044480
      %v234 = vsel %vm232, %v212, 0
      %236 = vmatprep.subr.mxu0 0.0
      %237 = vmatpush1.msra.mxu0 %v234
      %238 = vmatprep.subr.mxu0 0.0
      %239 = vmatpush1.msra.mxu0 0.0
      %240 = vmatprep.subr.mxu0 0.0
      %241 = vmatpush1.msra.mxu0 0.0
      %242 = vmatprep.subr.mxu0 0.0
      %243 = vmatpush1.msra.mxu0 0.0
      %244 = vmatprep.subr.mxu0 0.0
      %245 = vmatpush1.msra.mxu0 0.0
      %246 = vmatprep.subr.mxu0 0.0
      %247 = vmatpush1.msra.mxu0 0.0
      %248 = vmatprep.subr.mxu0 0.0
      %249 = vmatpush1.msra.mxu0 0.0
      %250 = vmatprep.subr.mxu0 0.0
      %251 = vmatpush1.msra.mxu0 0.0
      %252 = vmatprep.subr.mxu0 0.0
      %253 = vmatpush1.msra.mxu0 0.0
      %254 = vmatprep.subr.mxu0 0.0
      %255 = vmatpush1.msra.mxu0 0.0
      %256 = vmatprep.subr.mxu0 0.0
      %257 = vmatpush1.msra.mxu0 0.0
      %258 = vmatprep.subr.mxu0 0.0
      %259 = vmatpush1.msra.mxu0 0.0
      %260 = vmatprep.subr.mxu0 0.0
      %261 = vmatpush1.msra.mxu0 0.0
      %262 = vmatprep.subr.mxu0 0.0
      %263 = vmatpush1.msra.mxu0 0.0
      %264 = vmatprep.subr.mxu0 0.0
      %265 = vmatpush1.msra.mxu0 0.0
      %266 = vmatprep.subr.mxu0 0.0
      %267 = vmatpush1.msra.mxu0 0.0
      %268 = vmatprep.subr.mxu0 0.0
      %269 = vmatpush1.msra.mxu0 0.0
      %270 = vmatprep.subr.mxu0 0.0
      %271 = vmatpush1.msra.mxu0 0.0
      %272 = vmatprep.subr.mxu0 0.0
      %273 = vmatpush1.msra.mxu0 0.0
      %274 = vmatprep.subr.mxu0 0.0
      %275 = vmatpush1.msra.mxu0 0.0
      %276 = vmatprep.subr.mxu0 0.0
      %277 = vmatpush1.msra.mxu0 0.0
      %278 = vmatprep.subr.mxu0 0.0
      %279 = vmatpush1.msra.mxu0 0.0
      %280 = vmatprep.subr.mxu0 0.0
      %281 = vmatpush1.msra.mxu0 0.0
      %282 = vmatprep.subr.mxu0 0.0
      %283 = vmatpush1.msra.mxu0 0.0
      %284 = vmatprep.subr.mxu0 0.0
      %285 = vmatpush1.msra.mxu0 0.0
      %286 = vmatprep.subr.mxu0 0.0
      %287 = vmatpush1.msra.mxu0 0.0
      %288 = vmatprep.subr.mxu0 0.0
      %289 = vmatpush1.msra.mxu0 0.0
      %290 = vmatprep.subr.mxu0 0.0
      %291 = vmatpush1.msra.mxu0 0.0
      %292 = vmatprep.subr.mxu0 0.0
      %293 = vmatpush1.msra.mxu0 0.0
      %294 = vmatprep.subr.mxu0 0.0
      %295 = vmatpush1.msra.mxu0 0.0
      %296 = vmatprep.subr.mxu0 0.0
      %297 = vmatpush1.msra.mxu0 0.0
      %298 = vmatprep.subr.mxu0 0.0
      %299 = vmatpush1.msra.mxu0 0.0
      %300 = vmatprep.mubr.f32.mxu0 0.0
      %301 = vmatmul.mubr.f32.gmra.mrb[0].mxu0 %v215
      %v302 = vpop.f32.mrb[0].mxu0
      %v303 = vadd.f32 0.0, %v302
      %v304 = vpop.f32.mrb[0].mxu0
      %305 = vmatprep.mubr.f32.mxu0 0.0
      %306 = vmatmul.mubr.f32.gmra.mrb[0].mxu0 %v218
      %v307 = vpop.f32.mrb[0].mxu0
      %v308 = vadd.f32 0.0, %v307
      %v309 = vpop.f32.mrb[0].mxu0
      %310 = vmatprep.mubr.f32.mxu0 0.0
      %311 = vmatmul.mubr.f32.gmra.mrb[0].mxu0 %v221
      %v312 = vpop.f32.mrb[0].mxu0
      %v313 = vadd.f32 0.0, %v312
      %v314 = vpop.f32.mrb[0].mxu0
      %315 = vmatprep.mubr.f32.mxu0 0.0
      %316 = vmatmul.mubr.f32.gmra.mrb[0].mxu0 %v224
      %v317 = vpop.f32.mrb[0].mxu0
      %v318 = vadd.f32 0.0, %v317
      %v319 = vpop.f32.mrb[0].mxu0
      %320 = vmatprep.mubr.f32.mxu0 0.0
      %321 = vmatmul.mubr.f32.gmra.mrb[0].mxu0 %v227
      %v322 = vpop.f32.mrb[0].mxu0
      %v323 = vadd.f32 0.0, %v322
      %v324 = vpop.f32.mrb[0].mxu0
      %325 = vmatprep.mubr.f32.mxu0 0.0
      %326 = vmatmul.mubr.f32.gmra.mrb[0].mxu0 %v230
      %v327 = vpop.f32.mrb[0].mxu0
      %v328 = vadd.f32 0.0, %v327
      %v329 = vpop.f32.mrb[0].mxu0
      %330 = vdwg.mxu0
      %v332 = vsel %vm213, %v196, 0
      %v335 = vsel %vm213, %v197, 0
      %v338 = vsel %vm213, %v198, 0
      %v341 = vsel %vm213, %v199, 0
      %v344 = vsel %vm213, %v200, 0
      %v347 = vsel %vm213, %v201, 0
      %v350 = vsel %vm232, %v202, 0
      %352 = vmatprep.subr.mxu0 0.0
      %353 = vmatpush1.msra.mxu0 %v350
      %354 = vmatprep.subr.mxu0 0.0
      %355 = vmatpush1.msra.mxu0 0.0
      %356 = vmatprep.subr.mxu0 0.0
      %357 = vmatpush1.msra.mxu0 0.0
      %358 = vmatprep.subr.mxu0 0.0
      %359 = vmatpush1.msra.mxu0 0.0
      %360 = vmatprep.subr.mxu0 0.0
      %361 = vmatpush1.msra.mxu0 0.0
      %362 = vmatprep.subr.mxu0 0.0
      %363 = vmatpush1.msra.mxu0 0.0
      %364 = vmatprep.subr.mxu0 0.0
      %365 = vmatpush1.msra.mxu0 0.0
      %366 = vmatprep.subr.mxu0 0.0
      %367 = vmatpush1.msra.mxu0 0.0
      %368 = vmatprep.subr.mxu0 0.0
      %369 = vmatpush1.msra.mxu0 0.0
      %370 = vmatprep.subr.mxu0 0.0
      %371 = vmatpush1.msra.mxu0 0.0
      %372 = vmatprep.subr.mxu0 0.0
      %373 = vmatpush1.msra.mxu0 0.0
      %374 = vmatprep.subr.mxu0 0.0
      %375 = vmatpush1.msra.mxu0 0.0
      %376 = vmatprep.subr.mxu0 0.0
      %377 = vmatpush1.msra.mxu0 0.0
      %378 = vmatprep.subr.mxu0 0.0
      %379 = vmatpush1.msra.mxu0 0.0
      %380 = vmatprep.subr.mxu0 0.0
      %381 = vmatpush1.msra.mxu0 0.0
      %382 = vmatprep.subr.mxu0 0.0
      %383 = vmatpush1.msra.mxu0 0.0
      %384 = vmatprep.subr.mxu0 0.0
      %385 = vmatpush1.msra.mxu0 0.0
      %386 = vmatprep.subr.mxu0 0.0
      %387 = vmatpush1.msra.mxu0 0.0
      %388 = vmatprep.subr.mxu0 0.0
      %389 = vmatpush1.msra.mxu0 0.0
      %390 = vmatprep.subr.mxu0 0.0
      %391 = vmatpush1.msra.mxu0 0.0
      %392 = vmatprep.subr.mxu0 0.0
      %393 = vmatpush1.msra.mxu0 0.0
      %394 = vmatprep.subr.mxu0 0.0
      %395 = vmatpush1.msra.mxu0 0.0
      %396 = vmatprep.subr.mxu0 0.0
      %397 = vmatpush1.msra.mxu0 0.0
      %398 = vmatprep.subr.mxu0 0.0
      %399 = vmatpush1.msra.mxu0 0.0
      %400 = vmatprep.subr.mxu0 0.0
      %401 = vmatpush1.msra.mxu0 0.0
      %402 = vmatprep.subr.mxu0 0.0
      %403 = vmatpush1.msra.mxu0 0.0
      %404 = vmatprep.subr.mxu0 0.0
      %405 = vmatpush1.msra.mxu0 0.0
      %406 = vmatprep.subr.mxu0 0.0
      %407 = vmatpush1.msra.mxu0 0.0
      %408 = vmatprep.subr.mxu0 0.0
      %409 = vmatpush1.msra.mxu0 0.0
      %410 = vmatprep.subr.mxu0 0.0
      %411 = vmatpush1.msra.mxu0 0.0
      %412 = vmatprep.subr.mxu0 0.0
      %413 = vmatpush1.msra.mxu0 0.0
      %414 = vmatprep.subr.mxu0 0.0
      %415 = vmatpush1.msra.mxu0 0.0
      %416 = vmatprep.mubr.f32.mxu0 0.0
      %417 = vmatmul.mubr.f32.gmra.mrb[0].mxu0 %v332
      %v418 = vpop.f32.mrb[0].mxu0
      %v419 = vadd.f32 %v303, %v418
      %v420 = vpop.f32.mrb[0].mxu0
      %421 = vmatprep.mubr.f32.mxu0 0.0
      %422 = vmatmul.mubr.f32.gmra.mrb[0].mxu0 %v335
      %v423 = vpop.f32.mrb[0].mxu0
      %v424 = vadd.f32 %v308, %v423
      %v425 = vpop.f32.mrb[0].mxu0
      %426 = vmatprep.mubr.f32.mxu0 0.0
      %427 = vmatmul.mubr.f32.gmra.mrb[0].mxu0 %v338
      %v428 = vpop.f32.mrb[0].mxu0
      %v429 = vadd.f32 %v313, %v428
      %v430 = vpop.f32.mrb[0].mxu0
      %431 = vmatprep.mubr.f32.mxu0 0.0
      %432 = vmatmul.mubr.f32.gmra.mrb[0].mxu0 %v341
      %v433 = vpop.f32.mrb[0].mxu0
      %v434 = vadd.f32 %v318, %v433
      %v435 = vpop.f32.mrb[0].mxu0
      %436 = vmatprep.mubr.f32.mxu0 0.0
      %437 = vmatmul.mubr.f32.gmra.mrb[0].mxu0 %v344
      %v438 = vpop.f32.mrb[0].mxu0
      %v439 = vadd.f32 %v323, %v438
      %v440 = vpop.f32.mrb[0].mxu0
      %441 = vmatprep.mubr.f32.mxu0 0.0
      %442 = vmatmul.mubr.f32.gmra.mrb[0].mxu0 %v347
      %v443 = vpop.f32.mrb[0].mxu0
      %v444 = vadd.f32 %v328, %v443
      %v445 = vpop.f32.mrb[0].mxu0
      %446 = vdwg.mxu0
      %s447 = sadd.s32 %s194, 2
      %s448 = scalar_lea.vmem %s183, %s447
      %v449 = vld [vmem:[%s448] sm:$0xff]
      %v450 = vld [vmem:[%s448 + $0x8] sm:$0xff]
      %v451 = vld [vmem:[%s448 + $0x10] sm:$0xff]
      %v452 = vld [vmem:[%s448 + $0x18] sm:$0xff]
      %v453 = vld [vmem:[%s448 + $0x20] sm:$0xff]
      %v454 = vld [vmem:[%s448 + $0x28] sm:$0xff]
      %s455 = scalar_lea.vmem %s1, 16
      %v456 = vld [vmem:[%s455] sm:$0x1f]
      %v458 = vsel %vm213, %v449, 0
      %v461 = vsel %vm213, %v450, 0
      %v464 = vsel %vm213, %v451, 0
      %v467 = vsel %vm213, %v452, 0
      %v470 = vsel %vm213, %v453, 0
      %v473 = vsel %vm213, %v454, 0
      %v476 = vsel %vm232, %v456, 0
      %478 = vmatprep.subr.mxu0 0.0
      %479 = vmatpush1.msra.mxu0 %v476
      %480 = vmatprep.subr.mxu0 0.0
      %481 = vmatpush1.msra.mxu0 0.0
      %482 = vmatprep.subr.mxu0 0.0
      %483 = vmatpush1.msra.mxu0 0.0
      %484 = vmatprep.subr.mxu0 0.0
      %485 = vmatpush1.msra.mxu0 0.0
      %486 = vmatprep.subr.mxu0 0.0
      %487 = vmatpush1.msra.mxu0 0.0
      %488 = vmatprep.subr.mxu0 0.0
      %489 = vmatpush1.msra.mxu0 0.0
      %490 = vmatprep.subr.mxu0 0.0
      %491 = vmatpush1.msra.mxu0 0.0
      %492 = vmatprep.subr.mxu0 0.0
      %493 = vmatpush1.msra.mxu0 0.0
      %494 = vmatprep.subr.mxu0 0.0
      %495 = vmatpush1.msra.mxu0 0.0
      %496 = vmatprep.subr.mxu0 0.0
      %497 = vmatpush1.msra.mxu0 0.0
      %498 = vmatprep.subr.mxu0 0.0
      %499 = vmatpush1.msra.mxu0 0.0
      %500 = vmatprep.subr.mxu0 0.0
      %501 = vmatpush1.msra.mxu0 0.0
      %502 = vmatprep.subr.mxu0 0.0
      %503 = vmatpush1.msra.mxu0 0.0
      %504 = vmatprep.subr.mxu0 0.0
      %505 = vmatpush1.msra.mxu0 0.0
      %506 = vmatprep.subr.mxu0 0.0
      %507 = vmatpush1.msra.mxu0 0.0
      %508 = vmatprep.subr.mxu0 0.0
      %509 = vmatpush1.msra.mxu0 0.0
      %510 = vmatprep.subr.mxu0 0.0
      %511 = vmatpush1.msra.mxu0 0.0
      %512 = vmatprep.subr.mxu0 0.0
      %513 = vmatpush1.msra.mxu0 0.0
      %514 = vmatprep.subr.mxu0 0.0
      %515 = vmatpush1.msra.mxu0 0.0
      %516 = vmatprep.subr.mxu0 0.0
      %517 = vmatpush1.msra.mxu0 0.0
      %518 = vmatprep.subr.mxu0 0.0
      %519 = vmatpush1.msra.mxu0 0.0
      %520 = vmatprep.subr.mxu0 0.0
      %521 = vmatpush1.msra.mxu0 0.0
      %522 = vmatprep.subr.mxu0 0.0
      %523 = vmatpush1.msra.mxu0 0.0
      %524 = vmatprep.subr.mxu0 0.0
      %525 = vmatpush1.msra.mxu0 0.0
      %526 = vmatprep.subr.mxu0 0.0
      %527 = vmatpush1.msra.mxu0 0.0
      %528 = vmatprep.subr.mxu0 0.0
      %529 = vmatpush1.msra.mxu0 0.0
      %530 = vmatprep.subr.mxu0 0.0
      %531 = vmatpush1.msra.mxu0 0.0
      %532 = vmatprep.subr.mxu0 0.0
      %533 = vmatpush1.msra.mxu0 0.0
      %534 = vmatprep.subr.mxu0 0.0
      %535 = vmatpush1.msra.mxu0 0.0
      %536 = vmatprep.subr.mxu0 0.0
      %537 = vmatpush1.msra.mxu0 0.0
      %538 = vmatprep.subr.mxu0 0.0
      %539 = vmatpush1.msra.mxu0 0.0
      %540 = vmatprep.subr.mxu0 0.0
      %541 = vmatpush1.msra.mxu0 0.0
      %542 = vmatprep.mubr.f32.mxu0 0.0
      %543 = vmatmul.mubr.f32.gmra.mrb[0].mxu0 %v458
      %v544 = vpop.f32.mrb[0].mxu0
      %v545 = vadd.f32 0.0, %v544
      %v546 = vpop.f32.mrb[0].mxu0
      %547 = vmatprep.mubr.f32.mxu0 0.0
      %548 = vmatmul.mubr.f32.gmra.mrb[0].mxu0 %v461
      %v549 = vpop.f32.mrb[0].mxu0
      %v550 = vadd.f32 0.0, %v549
      %v551 = vpop.f32.mrb[0].mxu0
      %552 = vmatprep.mubr.f32.mxu0 0.0
      %553 = vmatmul.mubr.f32.gmra.mrb[0].mxu0 %v464
      %v554 = vpop.f32.mrb[0].mxu0
      %v555 = vadd.f32 0.0, %v554
      %v556 = vpop.f32.mrb[0].mxu0
      %557 = vmatprep.mubr.f32.mxu0 0.0
      %558 = vmatmul.mubr.f32.gmra.mrb[0].mxu0 %v467
      %v559 = vpop.f32.mrb[0].mxu0
      %v560 = vadd.f32 0.0, %v559
      %v561 = vpop.f32.mrb[0].mxu0
      %562 = vmatprep.mubr.f32.mxu0 0.0
      %563 = vmatmul.mubr.f32.gmra.mrb[0].mxu0 %v470
      %v564 = vpop.f32.mrb[0].mxu0
      %v565 = vadd.f32 0.0, %v564
      %v566 = vpop.f32.mrb[0].mxu0
      %567 = vmatprep.mubr.f32.mxu0 0.0
      %568 = vmatmul.mubr.f32.gmra.mrb[0].mxu0 %v473
      %v569 = vpop.f32.mrb[0].mxu0
      %v570 = vadd.f32 0.0, %v569
      %v571 = vpop.f32.mrb[0].mxu0
      %572 = vdwg.mxu0
      %v573 = vadd.f32 %v419, %v545
      %v574 = vadd.f32 %v424, %v550
      %v575 = vadd.f32 %v429, %v555
      %v576 = vadd.f32 %v434, %v560
      %v577 = vadd.f32 %v439, %v565
      %v578 = vadd.f32 %v444, %v570
      %s579 = sadd.s32 %s194, 8
      %s580 = scalar_lea.vmem %s183, %s579
      %v581 = vld [vmem:[%s580] sm:$0xff]
      %v582 = vld [vmem:[%s580 + $0x8] sm:$0xff]
      %v583 = vld [vmem:[%s580 + $0x10] sm:$0xff]
      %v584 = vld [vmem:[%s580 + $0x18] sm:$0xff]
      %v585 = vld [vmem:[%s580 + $0x20] sm:$0xff]
      %v586 = vld [vmem:[%s580 + $0x28] sm:$0xff]
      %s587 = scalar_lea.vmem %s1, 24
      %v588 = vld [vmem:[%s587] sm:$0x1f]
      %v590 = vsel %vm213, %v581, 0
      %v593 = vsel %vm213, %v582, 0
      %v596 = vsel %vm213, %v583, 0
      %v599 = vsel %vm213, %v584, 0
      %v602 = vsel %vm213, %v585, 0
      %v605 = vsel %vm213, %v586, 0
      %v608 = vsel %vm232, %v588, 0
      %610 = vmatprep.subr.mxu0 0.0
      %611 = vmatpush1.msra.mxu0 %v608
      %612 = vmatprep.subr.mxu0 0.0
      %613 = vmatpush1.msra.mxu0 0.0
      %614 = vmatprep.subr.mxu0 0.0
      %615 = vmatpush1.msra.mxu0 0.0
      %616 = vmatprep.subr.mxu0 0.0
      %617 = vmatpush1.msra.mxu0 0.0
      %618 = vmatprep.subr.mxu0 0.0
      %619 = vmatpush1.msra.mxu0 0.0
      %620 = vmatprep.subr.mxu0 0.0
      %621 = vmatpush1.msra.mxu0 0.0
      %622 = vmatprep.subr.mxu0 0.0
      %623 = vmatpush1.msra.mxu0 0.0
      %624 = vmatprep.subr.mxu0 0.0
      %625 = vmatpush1.msra.mxu0 0.0
      %626 = vmatprep.subr.mxu0 0.0
      %627 = vmatpush1.msra.mxu0 0.0
      %628 = vmatprep.subr.mxu0 0.0
      %629 = vmatpush1.msra.mxu0 0.0
      %630 = vmatprep.subr.mxu0 0.0
      %631 = vmatpush1.msra.mxu0 0.0
      %632 = vmatprep.subr.mxu0 0.0
      %633 = vmatpush1.msra.mxu0 0.0
      %634 = vmatprep.subr.mxu0 0.0
      %635 = vmatpush1.msra.mxu0 0.0
      %636 = vmatprep.subr.mxu0 0.0
      %637 = vmatpush1.msra.mxu0 0.0
      %638 = vmatprep.subr.mxu0 0.0
      %639 = vmatpush1.msra.mxu0 0.0
      %640 = vmatprep.subr.mxu0 0.0
      %641 = vmatpush1.msra.mxu0 0.0
      %642 = vmatprep.subr.mxu0 0.0
      %643 = vmatpush1.msra.mxu0 0.0
      %644 = vmatprep.subr.mxu0 0.0
      %645 = vmatpush1.msra.mxu0 0.0
      %646 = vmatprep.subr.mxu0 0.0
      %647 = vmatpush1.msra.mxu0 0.0
      %648 = vmatprep.subr.mxu0 0.0
      %649 = vmatpush1.msra.mxu0 0.0
      %650 = vmatprep.subr.mxu0 0.0
      %651 = vmatpush1.msra.mxu0 0.0
      %652 = vmatprep.subr.mxu0 0.0
      %653 = vmatpush1.msra.mxu0 0.0
      %654 = vmatprep.subr.mxu0 0.0
      %655 = vmatpush1.msra.mxu0 0.0
      %656 = vmatprep.subr.mxu0 0.0
      %657 = vmatpush1.msra.mxu0 0.0
      %658 = vmatprep.subr.mxu0 0.0
      %659 = vmatpush1.msra.mxu0 0.0
      %660 = vmatprep.subr.mxu0 0.0
      %661 = vmatpush1.msra.mxu0 0.0
      %662 = vmatprep.subr.mxu0 0.0
      %663 = vmatpush1.msra.mxu0 0.0
      %664 = vmatprep.subr.mxu0 0.0
      %665 = vmatpush1.msra.mxu0 0.0
      %666 = vmatprep.subr.mxu0 0.0
      %667 = vmatpush1.msra.mxu0 0.0
      %668 = vmatprep.subr.mxu0 0.0
      %669 = vmatpush1.msra.mxu0 0.0
      %670 = vmatprep.subr.mxu0 0.0
      %671 = vmatpush1.msra.mxu0 0.0
      %672 = vmatprep.subr.mxu0 0.0
      %673 = vmatpush1.msra.mxu0 0.0
      %674 = vmatprep.mubr.f32.mxu0 0.0
      %675 = vmatmul.mubr.f32.gmra.mrb[0].mxu0 %v590
      %v676 = vpop.f32.mrb[0].mxu0
      %v677 = vadd.f32 0.0, %v676
      %v678 = vpop.f32.mrb[0].mxu0
      %679 = vmatprep.mubr.f32.mxu0 0.0
      %680 = vmatmul.mubr.f32.gmra.mrb[0].mxu0 %v593
      %v681 = vpop.f32.mrb[0].mxu0
      %v682 = vadd.f32 0.0, %v681
      %v683 = vpop.f32.mrb[0].mxu0
      %684 = vmatprep.mubr.f32.mxu0 0.0
      %685 = vmatmul.mubr.f32.gmra.mrb[0].mxu0 %v596
      %v686 = vpop.f32.mrb[0].mxu0
      %v687 = vadd.f32 0.0, %v686
      %v688 = vpop.f32.mrb[0].mxu0
      %689 = vmatprep.mubr.f32.mxu0 0.0
      %690 = vmatmul.mubr.f32.gmra.mrb[0].mxu0 %v599
      %v691 = vpop.f32.mrb[0].mxu0
      %v692 = vadd.f32 0.0, %v691
      %v693 = vpop.f32.mrb[0].mxu0
      %694 = vmatprep.mubr.f32.mxu0 0.0
      %695 = vmatmul.mubr.f32.gmra.mrb[0].mxu0 %v602
      %v696 = vpop.f32.mrb[0].mxu0
      %v697 = vadd.f32 0.0, %v696
      %v698 = vpop.f32.mrb[0].mxu0
      %699 = vmatprep.mubr.f32.mxu0 0.0
      %700 = vmatmul.mubr.f32.gmra.mrb[0].mxu0 %v605
      %v701 = vpop.f32.mrb[0].mxu0
      %v702 = vadd.f32 0.0, %v701
      %v703 = vpop.f32.mrb[0].mxu0
      %704 = vdwg.mxu0
      %v705 = vadd.f32 %v573, %v677
      %v706 = vadd.f32 %v574, %v682
      %v707 = vadd.f32 %v575, %v687
      %v708 = vadd.f32 %v576, %v692
      %v709 = vadd.f32 %v577, %v697
      %v710 = vadd.f32 %v578, %v702
      %s711 = sadd.s32 %s194, 9
      %s712 = scalar_lea.vmem %s183, %s711
      %v713 = vld [vmem:[%s712] sm:$0xff]
      %v714 = vld [vmem:[%s712 + $0x8] sm:$0xff]
      %v715 = vld [vmem:[%s712 + $0x10] sm:$0xff]
      %v716 = vld [vmem:[%s712 + $0x18] sm:$0xff]
      %v717 = vld [vmem:[%s712 + $0x20] sm:$0xff]
      %v718 = vld [vmem:[%s712 + $0x28] sm:$0xff]
      %s719 = scalar_lea.vmem %s1, 32
      %v720 = vld [vmem:[%s719] sm:$0x1f]
      %v722 = vsel %vm213, %v713, 0
      %v725 = vsel %vm213, %v714, 0
      %v728 = vsel %vm213, %v715, 0
      %v731 = vsel %vm213, %v716, 0
      %v734 = vsel %vm213, %v717, 0
      %v737 = vsel %vm213, %v718, 0
      %v740 = vsel %vm232, %v720, 0
      %742 = vmatprep.subr.mxu0 0.0
      %743 = vmatpush1.msra.mxu0 %v740
      %744 = vmatprep.subr.mxu0 0.0
      %745 = vmatpush1.msra.mxu0 0.0
      %746 = vmatprep.subr.mxu0 0.0
      %747 = vmatpush1.msra.mxu0 0.0
      %748 = vmatprep.subr.mxu0 0.0
      %749 = vmatpush1.msra.mxu0 0.0
      %750 = vmatprep.subr.mxu0 0.0
      %751 = vmatpush1.msra.mxu0 0.0
      %752 = vmatprep.subr.mxu0 0.0
      %753 = vmatpush1.msra.mxu0 0.0
      %754 = vmatprep.subr.mxu0 0.0
      %755 = vmatpush1.msra.mxu0 0.0
      %756 = vmatprep.subr.mxu0 0.0
      %757 = vmatpush1.msra.mxu0 0.0
      %758 = vmatprep.subr.mxu0 0.0
      %759 = vmatpush1.msra.mxu0 0.0
      %760 = vmatprep.subr.mxu0 0.0
      %761 = vmatpush1.msra.mxu0 0.0
      %762 = vmatprep.subr.mxu0 0.0
      %763 = vmatpush1.msra.mxu0 0.0
      %764 = vmatprep.subr.mxu0 0.0
      %765 = vmatpush1.msra.mxu0 0.0
      %766 = vmatprep.subr.mxu0 0.0
      %767 = vmatpush1.msra.mxu0 0.0
      %768 = vmatprep.subr.mxu0 0.0
      %769 = vmatpush1.msra.mxu0 0.0
      %770 = vmatprep.subr.mxu0 0.0
      %771 = vmatpush1.msra.mxu0 0.0
      %772 = vmatprep.subr.mxu0 0.0
      %773 = vmatpush1.msra.mxu0 0.0
      %774 = vmatprep.subr.mxu0 0.0
      %775 = vmatpush1.msra.mxu0 0.0
      %776 = vmatprep.subr.mxu0 0.0
      %777 = vmatpush1.msra.mxu0 0.0
      %778 = vmatprep.subr.mxu0 0.0
      %779 = vmatpush1.msra.mxu0 0.0
      %780 = vmatprep.subr.mxu0 0.0
      %781 = vmatpush1.msra.mxu0 0.0
      %782 = vmatprep.subr.mxu0 0.0
      %783 = vmatpush1.msra.mxu0 0.0
      %784 = vmatprep.subr.mxu0 0.0
      %785 = vmatpush1.msra.mxu0 0.0
      %786 = vmatprep.subr.mxu0 0.0
      %787 = vmatpush1.msra.mxu0 0.0
      %788 = vmatprep.subr.mxu0 0.0
      %789 = vmatpush1.msra.mxu0 0.0
      %790 = vmatprep.subr.mxu0 0.0
      %791 = vmatpush1.msra.mxu0 0.0
      %792 = vmatprep.subr.mxu0 0.0
      %793 = vmatpush1.msra.mxu0 0.0
      %794 = vmatprep.subr.mxu0 0.0
      %795 = vmatpush1.msra.mxu0 0.0
      %796 = vmatprep.subr.mxu0 0.0
      %797 = vmatpush1.msra.mxu0 0.0
      %798 = vmatprep.subr.mxu0 0.0
      %799 = vmatpush1.msra.mxu0 0.0
      %800 = vmatprep.subr.mxu0 0.0
      %801 = vmatpush1.msra.mxu0 0.0
      %802 = vmatprep.subr.mxu0 0.0
      %803 = vmatpush1.msra.mxu0 0.0
      %804 = vmatprep.subr.mxu0 0.0
      %805 = vmatpush1.msra.mxu0 0.0
      %806 = vmatprep.mubr.f32.mxu0 0.0
      %807 = vmatmul.mubr.f32.gmra.mrb[0].mxu0 %v722
      %v808 = vpop.f32.mrb[0].mxu0
      %v809 = vadd.f32 0.0, %v808
      %v810 = vpop.f32.mrb[0].mxu0
      %811 = vmatprep.mubr.f32.mxu0 0.0
      %812 = vmatmul.mubr.f32.gmra.mrb[0].mxu0 %v725
      %v813 = vpop.f32.mrb[0].mxu0
      %v814 = vadd.f32 0.0, %v813
      %v815 = vpop.f32.mrb[0].mxu0
      %816 = vmatprep.mubr.f32.mxu0 0.0
      %817 = vmatmul.mubr.f32.gmra.mrb[0].mxu0 %v728
      %v818 = vpop.f32.mrb[0].mxu0
      %v819 = vadd.f32 0.0, %v818
      %v820 = vpop.f32.mrb[0].mxu0
      %821 = vmatprep.mubr.f32.mxu0 0.0
      %822 = vmatmul.mubr.f32.gmra.mrb[0].mxu0 %v731
      %v823 = vpop.f32.mrb[0].mxu0
      %v824 = vadd.f32 0.0, %v823
      %v825 = vpop.f32.mrb[0].mxu0
      %826 = vmatprep.mubr.f32.mxu0 0.0
      %827 = vmatmul.mubr.f32.gmra.mrb[0].mxu0 %v734
      %v828 = vpop.f32.mrb[0].mxu0
      %v829 = vadd.f32 0.0, %v828
      %v830 = vpop.f32.mrb[0].mxu0
      %831 = vmatprep.mubr.f32.mxu0 0.0
      %832 = vmatmul.mubr.f32.gmra.mrb[0].mxu0 %v737
      %v833 = vpop.f32.mrb[0].mxu0
      %v834 = vadd.f32 0.0, %v833
      %v835 = vpop.f32.mrb[0].mxu0
      %836 = vdwg.mxu0
      %v837 = vadd.f32 %v705, %v809
      %v838 = vadd.f32 %v706, %v814
      %v839 = vadd.f32 %v707, %v819
      %v840 = vadd.f32 %v708, %v824
      %v841 = vadd.f32 %v709, %v829
      %v842 = vadd.f32 %v710, %v834
      %s843 = sadd.s32 %s194, 10
      %s844 = scalar_lea.vmem %s183, %s843
      %v845 = vld [vmem:[%s844] sm:$0xff]
      %v846 = vld [vmem:[%s844 + $0x8] sm:$0xff]
      %v847 = vld [vmem:[%s844 + $0x10] sm:$0xff]
      %v848 = vld [vmem:[%s844 + $0x18] sm:$0xff]
      %v849 = vld [vmem:[%s844 + $0x20] sm:$0xff]
      %v850 = vld [vmem:[%s844 + $0x28] sm:$0xff]
      %s851 = scalar_lea.vmem %s1, 40
      %v852 = vld [vmem:[%s851] sm:$0x1f]
      %v854 = vsel %vm213, %v845, 0
      %v857 = vsel %vm213, %v846, 0
      %v860 = vsel %vm213, %v847, 0
      %v863 = vsel %vm213, %v848, 0
      %v866 = vsel %vm213, %v849, 0
      %v869 = vsel %vm213, %v850, 0
      %v872 = vsel %vm232, %v852, 0
      %874 = vmatprep.subr.mxu0 0.0
      %875 = vmatpush1.msra.mxu0 %v872
      %876 = vmatprep.subr.mxu0 0.0
      %877 = vmatpush1.msra.mxu0 0.0
      %878 = vmatprep.subr.mxu0 0.0
      %879 = vmatpush1.msra.mxu0 0.0
      %880 = vmatprep.subr.mxu0 0.0
      %881 = vmatpush1.msra.mxu0 0.0
      %882 = vmatprep.subr.mxu0 0.0
      %883 = vmatpush1.msra.mxu0 0.0
      %884 = vmatprep.subr.mxu0 0.0
      %885 = vmatpush1.msra.mxu0 0.0
      %886 = vmatprep.subr.mxu0 0.0
      %887 = vmatpush1.msra.mxu0 0.0
      %888 = vmatprep.subr.mxu0 0.0
      %889 = vmatpush1.msra.mxu0 0.0
      %890 = vmatprep.subr.mxu0 0.0
      %891 = vmatpush1.msra.mxu0 0.0
      %892 = vmatprep.subr.mxu0 0.0
      %893 = vmatpush1.msra.mxu0 0.0
      %894 = vmatprep.subr.mxu0 0.0
      %895 = vmatpush1.msra.mxu0 0.0
      %896 = vmatprep.subr.mxu0 0.0
      %897 = vmatpush1.msra.mxu0 0.0
      %898 = vmatprep.subr.mxu0 0.0
      %899 = vmatpush1.msra.mxu0 0.0
      %900 = vmatprep.subr.mxu0 0.0
      %901 = vmatpush1.msra.mxu0 0.0
      %902 = vmatprep.subr.mxu0 0.0
      %903 = vmatpush1.msra.mxu0 0.0
      %904 = vmatprep.subr.mxu0 0.0
      %905 = vmatpush1.msra.mxu0 0.0
      %906 = vmatprep.subr.mxu0 0.0
      %907 = vmatpush1.msra.mxu0 0.0
      %908 = vmatprep.subr.mxu0 0.0
      %909 = vmatpush1.msra.mxu0 0.0
      %910 = vmatprep.subr.mxu0 0.0
      %911 = vmatpush1.msra.mxu0 0.0
      %912 = vmatprep.subr.mxu0 0.0
      %913 = vmatpush1.msra.mxu0 0.0
      %914 = vmatprep.subr.mxu0 0.0
      %915 = vmatpush1.msra.mxu0 0.0
      %916 = vmatprep.subr.mxu0 0.0
      %917 = vmatpush1.msra.mxu0 0.0
      %918 = vmatprep.subr.mxu0 0.0
      %919 = vmatpush1.msra.mxu0 0.0
      %920 = vmatprep.subr.mxu0 0.0
      %921 = vmatpush1.msra.mxu0 0.0
      %922 = vmatprep.subr.mxu0 0.0
      %923 = vmatpush1.msra.mxu0 0.0
      %924 = vmatprep.subr.mxu0 0.0
      %925 = vmatpush1.msra.mxu0 0.0
      %926 = vmatprep.subr.mxu0 0.0
      %927 = vmatpush1.msra.mxu0 0.0
      %928 = vmatprep.subr.mxu0 0.0
      %929 = vmatpush1.msra.mxu0 0.0
      %930 = vmatprep.subr.mxu0 0.0
      %931 = vmatpush1.msra.mxu0 0.0
      %932 = vmatprep.subr.mxu0 0.0
      %933 = vmatpush1.msra.mxu0 0.0
      %934 = vmatprep.subr.mxu0 0.0
      %935 = vmatpush1.msra.mxu0 0.0
      %936 = vmatprep.subr.mxu0 0.0
      %937 = vmatpush1.msra.mxu0 0.0
      %938 = vmatprep.mubr.f32.mxu0 0.0
      %939 = vmatmul.mubr.f32.gmra.mrb[0].mxu0 %v854
      %v940 = vpop.f32.mrb[0].mxu0
      %v941 = vadd.f32 0.0, %v940
      %v942 = vpop.f32.mrb[0].mxu0
      %943 = vmatprep.mubr.f32.mxu0 0.0
      %944 = vmatmul.mubr.f32.gmra.mrb[0].mxu0 %v857
      %v945 = vpop.f32.mrb[0].mxu0
      %v946 = vadd.f32 0.0, %v945
      %v947 = vpop.f32.mrb[0].mxu0
      %948 = vmatprep.mubr.f32.mxu0 0.0
      %949 = vmatmul.mubr.f32.gmra.mrb[0].mxu0 %v860
      %v950 = vpop.f32.mrb[0].mxu0
      %v951 = vadd.f32 0.0, %v950
      %v952 = vpop.f32.mrb[0].mxu0
      %953 = vmatprep.mubr.f32.mxu0 0.0
      %954 = vmatmul.mubr.f32.gmra.mrb[0].mxu0 %v863
      %v955 = vpop.f32.mrb[0].mxu0
      %v956 = vadd.f32 0.0, %v955
      %v957 = vpop.f32.mrb[0].mxu0
      %958 = vmatprep.mubr.f32.mxu0 0.0
      %959 = vmatmul.mubr.f32.gmra.mrb[0].mxu0 %v866
      %v960 = vpop.f32.mrb[0].mxu0
      %v961 = vadd.f32 0.0, %v960
      %v962 = vpop.f32.mrb[0].mxu0
      %963 = vmatprep.mubr.f32.mxu0 0.0
      %964 = vmatmul.mubr.f32.gmra.mrb[0].mxu0 %v869
      %v965 = vpop.f32.mrb[0].mxu0
      %v966 = vadd.f32 0.0, %v965
      %v967 = vpop.f32.mrb[0].mxu0
      %968 = vdwg.mxu0
      %v969 = vadd.f32 %v837, %v941
      %v970 = vadd.f32 %v838, %v946
      %v971 = vadd.f32 %v839, %v951
      %v972 = vadd.f32 %v840, %v956
      %v973 = vadd.f32 %v841, %v961
      %v974 = vadd.f32 %v842, %v966
      %s975 = sadd.s32 %s194, 16
      %s976 = scalar_lea.vmem %s183, %s975
      %v977 = vld [vmem:[%s976] sm:$0xff]
      %v978 = vld [vmem:[%s976 + $0x8] sm:$0xff]
      %v979 = vld [vmem:[%s976 + $0x10] sm:$0xff]
      %v980 = vld [vmem:[%s976 + $0x18] sm:$0xff]
      %v981 = vld [vmem:[%s976 + $0x20] sm:$0xff]
      %v982 = vld [vmem:[%s976 + $0x28] sm:$0xff]
      %s983 = scalar_lea.vmem %s1, 48
      %v984 = vld [vmem:[%s983] sm:$0x1f]
      %v986 = vsel %vm213, %v977, 0
      %v989 = vsel %vm213, %v978, 0
      %v992 = vsel %vm213, %v979, 0
      %v995 = vsel %vm213, %v980, 0
      %v998 = vsel %vm213, %v981, 0
      %v1001 = vsel %vm213, %v982, 0
      %v1004 = vsel %vm232, %v984, 0
      %1006 = vmatprep.subr.mxu0 0.0
      %1007 = vmatpush1.msra.mxu0 %v1004
      %1008 = vmatprep.subr.mxu0 0.0
      %1009 = vmatpush1.msra.mxu0 0.0
      %1010 = vmatprep.subr.mxu0 0.0
      %1011 = vmatpush1.msra.mxu0 0.0
      %1012 = vmatprep.subr.mxu0 0.0
      %1013 = vmatpush1.msra.mxu0 0.0
      %1014 = vmatprep.subr.mxu0 0.0
      %1015 = vmatpush1.msra.mxu0 0.0
      %1016 = vmatprep.subr.mxu0 0.0
      %1017 = vmatpush1.msra.mxu0 0.0
      %1018 = vmatprep.subr.mxu0 0.0
      %1019 = vmatpush1.msra.mxu0 0.0
      %1020 = vmatprep.subr.mxu0 0.0
      %1021 = vmatpush1.msra.mxu0 0.0
      %1022 = vmatprep.subr.mxu0 0.0
      %1023 = vmatpush1.msra.mxu0 0.0
      %1024 = vmatprep.subr.mxu0 0.0
      %1025 = vmatpush1.msra.mxu0 0.0
      %1026 = vmatprep.subr.mxu0 0.0
      %1027 = vmatpush1.msra.mxu0 0.0
      %1028 = vmatprep.subr.mxu0 0.0
      %1029 = vmatpush1.msra.mxu0 0.0
      %1030 = vmatprep.subr.mxu0 0.0
      %1031 = vmatpush1.msra.mxu0 0.0
      %1032 = vmatprep.subr.mxu0 0.0
      %1033 = vmatpush1.msra.mxu0 0.0
      %1034 = vmatprep.subr.mxu0 0.0
      %1035 = vmatpush1.msra.mxu0 0.0
      %1036 = vmatprep.subr.mxu0 0.0
      %1037 = vmatpush1.msra.mxu0 0.0
      %1038 = vmatprep.subr.mxu0 0.0
      %1039 = vmatpush1.msra.mxu0 0.0
      %1040 = vmatprep.subr.mxu0 0.0
      %1041 = vmatpush1.msra.mxu0 0.0
      %1042 = vmatprep.subr.mxu0 0.0
      %1043 = vmatpush1.msra.mxu0 0.0
      %1044 = vmatprep.subr.mxu0 0.0
      %1045 = vmatpush1.msra.mxu0 0.0
      %1046 = vmatprep.subr.mxu0 0.0
      %1047 = vmatpush1.msra.mxu0 0.0
      %1048 = vmatprep.subr.mxu0 0.0
      %1049 = vmatpush1.msra.mxu0 0.0
      %1050 = vmatprep.subr.mxu0 0.0
      %1051 = vmatpush1.msra.mxu0 0.0
      %1052 = vmatprep.subr.mxu0 0.0
      %1053 = vmatpush1.msra.mxu0 0.0
      %1054 = vmatprep.subr.mxu0 0.0
      %1055 = vmatpush1.msra.mxu0 0.0
      %1056 = vmatprep.subr.mxu0 0.0
      %1057 = vmatpush1.msra.mxu0 0.0
      %1058 = vmatprep.subr.mxu0 0.0
      %1059 = vmatpush1.msra.mxu0 0.0
      %1060 = vmatprep.subr.mxu0 0.0
      %1061 = vmatpush1.msra.mxu0 0.0
      %1062 = vmatprep.subr.mxu0 0.0
      %1063 = vmatpush1.msra.mxu0 0.0
      %1064 = vmatprep.subr.mxu0 0.0
      %1065 = vmatpush1.msra.mxu0 0.0
      %1066 = vmatprep.subr.mxu0 0.0
      %1067 = vmatpush1.msra.mxu0 0.0
      %1068 = vmatprep.subr.mxu0 0.0
      %1069 = vmatpush1.msra.mxu0 0.0
      %1070 = vmatprep.mubr.f32.mxu0 0.0
      %1071 = vmatmul.mubr.f32.gmra.mrb[0].mxu0 %v986
      %v1072 = vpop.f32.mrb[0].mxu0
      %v1073 = vadd.f32 0.0, %v1072
      %v1074 = vpop.f32.mrb[0].mxu0
      %1075 = vmatprep.mubr.f32.mxu0 0.0
      %1076 = vmatmul.mubr.f32.gmra.mrb[0].mxu0 %v989
      %v1077 = vpop.f32.mrb[0].mxu0
      %v1078 = vadd.f32 0.0, %v1077
      %v1079 = vpop.f32.mrb[0].mxu0
      %1080 = vmatprep.mubr.f32.mxu0 0.0
      %1081 = vmatmul.mubr.f32.gmra.mrb[0].mxu0 %v992
      %v1082 = vpop.f32.mrb[0].mxu0
      %v1083 = vadd.f32 0.0, %v1082
      %v1084 = vpop.f32.mrb[0].mxu0
      %1085 = vmatprep.mubr.f32.mxu0 0.0
      %1086 = vmatmul.mubr.f32.gmra.mrb[0].mxu0 %v995
      %v1087 = vpop.f32.mrb[0].mxu0
      %v1088 = vadd.f32 0.0, %v1087
      %v1089 = vpop.f32.mrb[0].mxu0
      %1090 = vmatprep.mubr.f32.mxu0 0.0
      %1091 = vmatmul.mubr.f32.gmra.mrb[0].mxu0 %v998
      %v1092 = vpop.f32.mrb[0].mxu0
      %v1093 = vadd.f32 0.0, %v1092
      %v1094 = vpop.f32.mrb[0].mxu0
      %1095 = vmatprep.mubr.f32.mxu0 0.0
      %1096 = vmatmul.mubr.f32.gmra.mrb[0].mxu0 %v1001
      %v1097 = vpop.f32.mrb[0].mxu0
      %v1098 = vadd.f32 0.0, %v1097
      %v1099 = vpop.f32.mrb[0].mxu0
      %1100 = vdwg.mxu0
      %v1101 = vadd.f32 %v969, %v1073
      %v1102 = vadd.f32 %v970, %v1078
      %v1103 = vadd.f32 %v971, %v1083
      %v1104 = vadd.f32 %v972, %v1088
      %v1105 = vadd.f32 %v973, %v1093
      %v1106 = vadd.f32 %v974, %v1098
      %s1107 = sadd.s32 %s194, 17
      %s1108 = scalar_lea.vmem %s183, %s1107
      %v1109 = vld [vmem:[%s1108] sm:$0xff]
      %v1110 = vld [vmem:[%s1108 + $0x8] sm:$0xff]
      %v1111 = vld [vmem:[%s1108 + $0x10] sm:$0xff]
      %v1112 = vld [vmem:[%s1108 + $0x18] sm:$0xff]
      %v1113 = vld [vmem:[%s1108 + $0x20] sm:$0xff]
      %v1114 = vld [vmem:[%s1108 + $0x28] sm:$0xff]
      %s1115 = scalar_lea.vmem %s1, 56
      %v1116 = vld [vmem:[%s1115] sm:$0x1f]
      %v1118 = vsel %vm213, %v1109, 0
      %v1121 = vsel %vm213, %v1110, 0
      %v1124 = vsel %vm213, %v1111, 0
      %v1127 = vsel %vm213, %v1112, 0
      %v1130 = vsel %vm213, %v1113, 0
      %v1133 = vsel %vm213, %v1114, 0
      %v1136 = vsel %vm232, %v1116, 0
      %1138 = vmatprep.subr.mxu0 0.0
      %1139 = vmatpush1.msra.mxu0 %v1136
      %1140 = vmatprep.subr.mxu0 0.0
      %1141 = vmatpush1.msra.mxu0 0.0
      %1142 = vmatprep.subr.mxu0 0.0
      %1143 = vmatpush1.msra.mxu0 0.0
      %1144 = vmatprep.subr.mxu0 0.0
      %1145 = vmatpush1.msra.mxu0 0.0
      %1146 = vmatprep.subr.mxu0 0.0
      %1147 = vmatpush1.msra.mxu0 0.0
      %1148 = vmatprep.subr.mxu0 0.0
      %1149 = vmatpush1.msra.mxu0 0.0
      %1150 = vmatprep.subr.mxu0 0.0
      %1151 = vmatpush1.msra.mxu0 0.0
      %1152 = vmatprep.subr.mxu0 0.0
      %1153 = vmatpush1.msra.mxu0 0.0
      %1154 = vmatprep.subr.mxu0 0.0
      %1155 = vmatpush1.msra.mxu0 0.0
      %1156 = vmatprep.subr.mxu0 0.0
      %1157 = vmatpush1.msra.mxu0 0.0
      %1158 = vmatprep.subr.mxu0 0.0
      %1159 = vmatpush1.msra.mxu0 0.0
      %1160 = vmatprep.subr.mxu0 0.0
      %1161 = vmatpush1.msra.mxu0 0.0
      %1162 = vmatprep.subr.mxu0 0.0
      %1163 = vmatpush1.msra.mxu0 0.0
      %1164 = vmatprep.subr.mxu0 0.0
      %1165 = vmatpush1.msra.mxu0 0.0
      %1166 = vmatprep.subr.mxu0 0.0
      %1167 = vmatpush1.msra.mxu0 0.0
      %1168 = vmatprep.subr.mxu0 0.0
      %1169 = vmatpush1.msra.mxu0 0.0
      %1170 = vmatprep.subr.mxu0 0.0
      %1171 = vmatpush1.msra.mxu0 0.0
      %1172 = vmatprep.subr.mxu0 0.0
      %1173 = vmatpush1.msra.mxu0 0.0
      %1174 = vmatprep.subr.mxu0 0.0
      %1175 = vmatpush1.msra.mxu0 0.0
      %1176 = vmatprep.subr.mxu0 0.0
      %1177 = vmatpush1.msra.mxu0 0.0
      %1178 = vmatprep.subr.mxu0 0.0
      %1179 = vmatpush1.msra.mxu0 0.0
      %1180 = vmatprep.subr.mxu0 0.0
      %1181 = vmatpush1.msra.mxu0 0.0
      %1182 = vmatprep.subr.mxu0 0.0
      %1183 = vmatpush1.msra.mxu0 0.0
      %1184 = vmatprep.subr.mxu0 0.0
      %1185 = vmatpush1.msra.mxu0 0.0
      %1186 = vmatprep.subr.mxu0 0.0
      %1187 = vmatpush1.msra.mxu0 0.0
      %1188 = vmatprep.subr.mxu0 0.0
      %1189 = vmatpush1.msra.mxu0 0.0
      %1190 = vmatprep.subr.mxu0 0.0
      %1191 = vmatpush1.msra.mxu0 0.0
      %1192 = vmatprep.subr.mxu0 0.0
      %1193 = vmatpush1.msra.mxu0 0.0
      %1194 = vmatprep.subr.mxu0 0.0
      %1195 = vmatpush1.msra.mxu0 0.0
      %1196 = vmatprep.subr.mxu0 0.0
      %1197 = vmatpush1.msra.mxu0 0.0
      %1198 = vmatprep.subr.mxu0 0.0
      %1199 = vmatpush1.msra.mxu0 0.0
      %1200 = vmatprep.subr.mxu0 0.0
      %1201 = vmatpush1.msra.mxu0 0.0
      %1202 = vmatprep.mubr.f32.mxu0 0.0
      %1203 = vmatmul.mubr.f32.gmra.mrb[0].mxu0 %v1118
      %v1204 = vpop.f32.mrb[0].mxu0
      %v1205 = vadd.f32 0.0, %v1204
      %v1206 = vpop.f32.mrb[0].mxu0
      %1207 = vmatprep.mubr.f32.mxu0 0.0
      %1208 = vmatmul.mubr.f32.gmra.mrb[0].mxu0 %v1121
      %v1209 = vpop.f32.mrb[0].mxu0
      %v1210 = vadd.f32 0.0, %v1209
      %v1211 = vpop.f32.mrb[0].mxu0
      %1212 = vmatprep.mubr.f32.mxu0 0.0
      %1213 = vmatmul.mubr.f32.gmra.mrb[0].mxu0 %v1124
      %v1214 = vpop.f32.mrb[0].mxu0
      %v1215 = vadd.f32 0.0, %v1214
      %v1216 = vpop.f32.mrb[0].mxu0
      %1217 = vmatprep.mubr.f32.mxu0 0.0
      %1218 = vmatmul.mubr.f32.gmra.mrb[0].mxu0 %v1127
      %v1219 = vpop.f32.mrb[0].mxu0
      %v1220 = vadd.f32 0.0, %v1219
      %v1221 = vpop.f32.mrb[0].mxu0
      %1222 = vmatprep.mubr.f32.mxu0 0.0
      %1223 = vmatmul.mubr.f32.gmra.mrb[0].mxu0 %v1130
      %v1224 = vpop.f32.mrb[0].mxu0
      %v1225 = vadd.f32 0.0, %v1224
      %v1226 = vpop.f32.mrb[0].mxu0
      %1227 = vmatprep.mubr.f32.mxu0 0.0
      %1228 = vmatmul.mubr.f32.gmra.mrb[0].mxu0 %v1133
      %v1229 = vpop.f32.mrb[0].mxu0
      %v1230 = vadd.f32 0.0, %v1229
      %v1231 = vpop.f32.mrb[0].mxu0
      %1232 = vdwg.mxu0
      %v1233 = vadd.f32 %v1101, %v1205
      %v1234 = vadd.f32 %v1102, %v1210
      %v1235 = vadd.f32 %v1103, %v1215
      %v1236 = vadd.f32 %v1104, %v1220
      %v1237 = vadd.f32 %v1105, %v1225
      %v1238 = vadd.f32 %v1106, %v1230
      %s1239 = sadd.s32 %s194, 18
      %s1240 = scalar_lea.vmem %s183, %s1239
      %v1241 = vld [vmem:[%s1240] sm:$0xff]
      %v1242 = vld [vmem:[%s1240 + $0x8] sm:$0xff]
      %v1243 = vld [vmem:[%s1240 + $0x10] sm:$0xff]
      %v1244 = vld [vmem:[%s1240 + $0x18] sm:$0xff]
      %v1245 = vld [vmem:[%s1240 + $0x20] sm:$0xff]
      %v1246 = vld [vmem:[%s1240 + $0x28] sm:$0xff]
      %s1247 = scalar_lea.vmem %s1, 64
      %v1248 = vld [vmem:[%s1247] sm:$0x1f]
      %v1250 = vsel %vm213, %v1241, 0
      %v1253 = vsel %vm213, %v1242, 0
      %v1256 = vsel %vm213, %v1243, 0
      %v1259 = vsel %vm213, %v1244, 0
      %v1262 = vsel %vm213, %v1245, 0
      %v1265 = vsel %vm213, %v1246, 0
      %v1268 = vsel %vm232, %v1248, 0
      %1270 = vmatprep.subr.mxu0 0.0
      %1271 = vmatpush1.msra.mxu0 %v1268
      %1272 = vmatprep.subr.mxu0 0.0
      %1273 = vmatpush1.msra.mxu0 0.0
      %1274 = vmatprep.subr.mxu0 0.0
      %1275 = vmatpush1.msra.mxu0 0.0
      %1276 = vmatprep.subr.mxu0 0.0
      %1277 = vmatpush1.msra.mxu0 0.0
      %1278 = vmatprep.subr.mxu0 0.0
      %1279 = vmatpush1.msra.mxu0 0.0
      %1280 = vmatprep.subr.mxu0 0.0
      %1281 = vmatpush1.msra.mxu0 0.0
      %1282 = vmatprep.subr.mxu0 0.0
      %1283 = vmatpush1.msra.mxu0 0.0
      %1284 = vmatprep.subr.mxu0 0.0
      %1285 = vmatpush1.msra.mxu0 0.0
      %1286 = vmatprep.subr.mxu0 0.0
      %1287 = vmatpush1.msra.mxu0 0.0
      %1288 = vmatprep.subr.mxu0 0.0
      %1289 = vmatpush1.msra.mxu0 0.0
      %1290 = vmatprep.subr.mxu0 0.0
      %1291 = vmatpush1.msra.mxu0 0.0
      %1292 = vmatprep.subr.mxu0 0.0
      %1293 = vmatpush1.msra.mxu0 0.0
      %1294 = vmatprep.subr.mxu0 0.0
      %1295 = vmatpush1.msra.mxu0 0.0
      %1296 = vmatprep.subr.mxu0 0.0
      %1297 = vmatpush1.msra.mxu0 0.0
      %1298 = vmatprep.subr.mxu0 0.0
      %1299 = vmatpush1.msra.mxu0 0.0
      %1300 = vmatprep.subr.mxu0 0.0
      %1301 = vmatpush1.msra.mxu0 0.0
      %1302 = vmatprep.subr.mxu0 0.0
      %1303 = vmatpush1.msra.mxu0 0.0
      %1304 = vmatprep.subr.mxu0 0.0
      %1305 = vmatpush1.msra.mxu0 0.0
      %1306 = vmatprep.subr.mxu0 0.0
      %1307 = vmatpush1.msra.mxu0 0.0
      %1308 = vmatprep.subr.mxu0 0.0
      %1309 = vmatpush1.msra.mxu0 0.0
      %1310 = vmatprep.subr.mxu0 0.0
      %1311 = vmatpush1.msra.mxu0 0.0
      %1312 = vmatprep.subr.mxu0 0.0
      %1313 = vmatpush1.msra.mxu0 0.0
      %1314 = vmatprep.subr.mxu0 0.0
      %1315 = vmatpush1.msra.mxu0 0.0
      %1316 = vmatprep.subr.mxu0 0.0
      %1317 = vmatpush1.msra.mxu0 0.0
      %1318 = vmatprep.subr.mxu0 0.0
      %1319 = vmatpush1.msra.mxu0 0.0
      %1320 = vmatprep.subr.mxu0 0.0
      %1321 = vmatpush1.msra.mxu0 0.0
      %1322 = vmatprep.subr.mxu0 0.0
      %1323 = vmatpush1.msra.mxu0 0.0
      %1324 = vmatprep.subr.mxu0 0.0
      %1325 = vmatpush1.msra.mxu0 0.0
      %1326 = vmatprep.subr.mxu0 0.0
      %1327 = vmatpush1.msra.mxu0 0.0
      %1328 = vmatprep.subr.mxu0 0.0
      %1329 = vmatpush1.msra.mxu0 0.0
      %1330 = vmatprep.subr.mxu0 0.0
      %1331 = vmatpush1.msra.mxu0 0.0
      %1332 = vmatprep.subr.mxu0 0.0
      %1333 = vmatpush1.msra.mxu0 0.0
      %1334 = vmatprep.mubr.f32.mxu0 0.0
      %1335 = vmatmul.mubr.f32.gmra.mrb[0].mxu0 %v1250
      %v1336 = vpop.f32.mrb[0].mxu0
      %v1337 = vadd.f32 0.0, %v1336
      %v1338 = vpop.f32.mrb[0].mxu0
      %1339 = vmatprep.mubr.f32.mxu0 0.0
      %1340 = vmatmul.mubr.f32.gmra.mrb[0].mxu0 %v1253
      %v1341 = vpop.f32.mrb[0].mxu0
      %v1342 = vadd.f32 0.0, %v1341
      %v1343 = vpop.f32.mrb[0].mxu0
      %1344 = vmatprep.mubr.f32.mxu0 0.0
      %1345 = vmatmul.mubr.f32.gmra.mrb[0].mxu0 %v1256
      %v1346 = vpop.f32.mrb[0].mxu0
      %v1347 = vadd.f32 0.0, %v1346
      %v1348 = vpop.f32.mrb[0].mxu0
      %1349 = vmatprep.mubr.f32.mxu0 0.0
      %1350 = vmatmul.mubr.f32.gmra.mrb[0].mxu0 %v1259
      %v1351 = vpop.f32.mrb[0].mxu0
      %v1352 = vadd.f32 0.0, %v1351
      %v1353 = vpop.f32.mrb[0].mxu0
      %1354 = vmatprep.mubr.f32.mxu0 0.0
      %1355 = vmatmul.mubr.f32.gmra.mrb[0].mxu0 %v1262
      %v1356 = vpop.f32.mrb[0].mxu0
      %v1357 = vadd.f32 0.0, %v1356
      %v1358 = vpop.f32.mrb[0].mxu0
      %1359 = vmatprep.mubr.f32.mxu0 0.0
      %1360 = vmatmul.mubr.f32.gmra.mrb[0].mxu0 %v1265
      %v1361 = vpop.f32.mrb[0].mxu0
      %v1362 = vadd.f32 0.0, %v1361
      %v1363 = vpop.f32.mrb[0].mxu0
      %1364 = vdwg.mxu0
      %v1365 = vadd.f32 %v1233, %v1337
      %v1366 = vadd.f32 %v1234, %v1342
      %v1367 = vadd.f32 %v1235, %v1347
      %v1368 = vadd.f32 %v1236, %v1352
      %v1369 = vadd.f32 %v1237, %v1357
      %v1370 = vadd.f32 %v1238, %v1362
      %v1371 = vld [vmem:[%s2] sm:$0x1]
      %v1373 = vlaneseq
      %v1374 = vshrl.u32 %v1373, 7
      %v1375 = vsub.s32 0, %v1374
      %v1376 = vrot.slane %v1371, %v1375
      %v1378 = vadd.f32 %v1365, %v1376
      %v1379 = vadd.f32 %v1366, %v1376
      %v1380 = vadd.f32 %v1367, %v1376
      %v1381 = vadd.f32 %v1368, %v1376
      %v1382 = vadd.f32 %v1369, %v1376
      %v1383 = vadd.f32 %v1370, %v1376
      %1384 = vst [vmem:[%s192] sm:$0xff] %v1378
      %1385 = vst [vmem:[%s192 + $0x8] sm:$0xff] %v1379
      %1386 = vst [vmem:[%s192 + $0x10] sm:$0xff] %v1380
      %1387 = vst [vmem:[%s192 + $0x18] sm:$0xff] %v1381
      %1388 = vst [vmem:[%s192 + $0x20] sm:$0xff] %v1382
      %1389 = vst [vmem:[%s192 + $0x28] sm:$0xff] %v1383
      %s1390 = smul.u32 6, %s19
      %p1391 = scmp.lt.s32.totalorder %s18, 1
      %s1392 = scalar_select %p1391, %s18, 1
      %p1393 = scmp.lt.s32.totalorder %s1390, 5
      %s1394 = scalar_select %p1393, %s1390, 5
      %s1395 = smul.addr %s1392, 6
      %s1396 = sadd.s32 %s1394, %s1395
      %s1397 = smul.addr %s1396, 8
      %s1398 = scalar_lea.vmem %s3, %s1397
      // Predicated region
      $region33: #{fn.1} parent=31 // pred_check
        %p1399 = pneg %p114
      $region34: #{fn.1} parent=31 // pred_check_branch
        %1401 = sbr.rel (%p1399) target = $region36
      $region35: #{fn.1} parent=31 // pred_region
        %s1402 = smul.u32 6, %s19
      $region36: #{fn.1} parent=31 // pred_fallthru
        _
    $region32: #{fn.1} parent=5 // pred_fallthru
      _
    %p1403 = scmp.le.s32.totalorder 2, %s9
    // Predicated region
    $region37: #{fn.1} parent=5 // pred_check
      %p1404 = pneg %p1403
    $region38: #{fn.1} parent=5 // pred_check_branch
      %1406 = sbr.rel (%p1404) target = $region40
    $region39: #{fn.1} parent=5 // pred_region
      %s1407 = ssub.s32 %s9, 2
      // Predicated region
      $region41: #{fn.1} parent=39 // pred_check
        %p1408 = pneg %p120
      $region42: #{fn.1} parent=39 // pred_check_branch
        %1410 = sbr.rel (%p1408) target = $region44
      $region43: #{fn.1} parent=39 // pred_region
        %s1411 = smul.u32 6, %s21
        %p1412 = scmp.lt.s32.totalorder %s20, 1
        %s1413 = scalar_select %p1412, %s20, 1
        %p1414 = scmp.lt.s32.totalorder %s1411, 5
        %s1415 = scalar_select %p1414, %s1411, 5
        %s1416 = smul.addr %s1413, 6
        %s1417 = sadd.s32 %s1415, %s1416
        %s1418 = smul.addr %s1417, 8
        %s1419 = scalar_lea.vmem %s3, %s1418
      $region44: #{fn.1} parent=39 // pred_fallthru
        _
    $region40: #{fn.1} parent=5 // pred_fallthru
      _
  $region6: #{fn.1} parent=0 // loop_footer
    %s13 = sadd.s32 1, %s9
  $region7: #{fn.1} parent=0 // loop_footer_branch
    %8 = sbr.rel target = $region3
  $region8: #{fn.1} parent=0 // loop_exit
    _

</llo_original>
